<compile_context>
chip_gen: v7x
topology: tpu7x:2x2x1
jax: 0.10.0
libtpu: 0.0.40
codegen_flags: <defaults>
</compile_context>

<pallas_src>
import functools

import jax
import jax.numpy as jnp
from jax.experimental import pallas as pl
from jax.experimental.pallas import tpu as pltpu

LANE = 128  # TPU lane width


def _round_up(x, m):
    return (x + m - 1) // m * m


def _pad2(a, rows, cols):
    out = jnp.zeros((rows, cols), a.dtype)
    return out.at[: a.shape[0], : a.shape[1]].set(a)


def _vmem_limit(budget_bytes):
    # Actual resident-byte budget + generous headroom for compiler scratch.
    return int(
        min(max(32 * 1024 * 1024, 1.5 * budget_bytes + 4 * 1024 * 1024),
            128 * 1024 * 1024)
    )


# ----------------------------------------------------------------------------
# Fused 2-layer GCN kernel (single pallas_call)
#   grid = (layer l, row-tile i, reduction-tile k)
#   T[k] = In[k] @ W_layer   (built slice-by-slice during the i == 0 sweep)
#   H    = relu(A @ T0 + b1) (VMEM-resident bf16 scratch)
#   Out  = A @ T1 + b2       (f32, lane-dense 128-wide)
# ----------------------------------------------------------------------------
def _fused_gcn_kernel(a_ref, x_ref, w1_ref, w2_ref, b1_ref, b2_ref,
                      o_ref, t_ref, h_ref, acc_ref, *, tile):
    l = pl.program_id(0)          # layer index (0 or 1)
    i = pl.program_id(1)          # output row tile
    k = pl.program_id(2)          # reduction tile over A_hat columns
    nk = pl.num_programs(2)
    kk = pl.multiple_of(k * tile, tile)

    # Keep the (pinned) output buffer initialised so an early write-back can
    # never flush garbage rows (see out_specs index map below).
    @pl.when((l == 0) & (i == 0) & (k == 0))
    def _():
        o_ref[...] = jnp.zeros_like(o_ref)

    # --- distributed per-layer feature transform T = In @ W -----------------
    # One (tile, f) slice per k step of the i == 0 sweep, written just before
    # it is consumed; overlaps with the A-tile DMA stream instead of running
    # as a single serial whole-matrix GEMM at the head of the layer.
    @pl.when((l == 0) & (i == 0))
    def _():
        t_ref[pl.ds(kk, tile), :] = jnp.dot(
            x_ref[...], w1_ref[...], preferred_element_type=jnp.float32
        ).astype(t_ref.dtype)

    @pl.when((l == 1) & (i == 0))
    def _():
        t_ref[pl.ds(kk, tile), :] = jnp.dot(
            h_ref[pl.ds(kk, tile), :], w2_ref[...],
            preferred_element_type=jnp.float32,
        ).astype(t_ref.dtype)

    # --- neighborhood aggregation: acc += A_hat[i, k] @ T[k] ----------------
    @pl.when(k == 0)
    def _():
        acc_ref[...] = jnp.zeros_like(acc_ref)

    acc_ref[...] += jnp.dot(
        a_ref[...], t_ref[pl.ds(kk, tile), :], preferred_element_type=jnp.float32
    )

    # --- finalize row tile: bias (+relu); route to H scratch or output ------
    @pl.when((k == nk - 1) & (l == 0))
    def _():
        ii = pl.multiple_of(i * tile, tile)
        h_ref[pl.ds(ii, tile), :] = jnp.maximum(
            acc_ref[...] + b1_ref[...], 0.0
        ).astype(h_ref.dtype)

    @pl.when((k == nk - 1) & (l == 1))
    def _():
        o_ref[...] = acc_ref[...] + b2_ref[...]


def _x_index_map(l, i, k):
    # Stream X row-blocks only during the (layer 0, i == 0) sweep that builds
    # T0; everywhere else the index is pinned to block 0 so X is fetched from
    # HBM exactly once.  Pure integer arithmetic (scalar-core friendly).
    first_sweep = (1 - jnp.minimum(i, 1)) * (1 - l)
    return (k * first_sweep, 0)


def fused_gcn_forward(x, a_hat, params, *, tile):
    n, c_in = x.shape
    c_hid = params["w1"].shape[1]
    c_out = params["w2"].shape[1]

    f_in = _round_up(c_in, LANE)
    f = max(_round_up(c_hid, LANE), _round_up(c_out, LANE))  # common lane width
    n_p = _round_up(max(n, tile), tile)
    nt = n_p // tile

    bf = jnp.bfloat16
    a_p = _pad2(a_hat, n_p, n_p).astype(bf)
    x_p = _pad2(x, n_p, f_in).astype(bf)
    w1_p = _pad2(params["w1"], f_in, f).astype(bf)
    w2_p = _pad2(params["w2"], f, f).astype(bf)
    b1_p = _pad2(params["b1"], 1, f).astype(jnp.float32)
    b2_p = _pad2(params["b2"], 1, f).astype(jnp.float32)

    const = lambda l, i, k: (0, 0)   # resident blocks: DMA'd once

    budget = (
        2 * tile * tile * 2              # A tiles (double-buffered)
        + 2 * tile * f_in * 2            # streamed X blocks
        + 2 * (f_in * f + f * f) * 2     # W1, W2 (resident)
        + 2 * 2 * 8 * f * 4              # b1, b2 ((1,f) pads to 8 sublanes)
        + 2 * tile * f * 4               # output tiles
        + 2 * n_p * f * 2                # T + H scratch (bf16)
        + tile * f * 4                   # f32 accumulator
    )

    out_p = pl.pallas_call(
        functools.partial(_fused_gcn_kernel, tile=tile),
        out_shape=jax.ShapeDtypeStruct((n_p, f), jnp.float32),
        grid_spec=pltpu.PrefetchScalarGridSpec(
            num_scalar_prefetch=0,
            grid=(2, nt, nt),
            in_specs=[
                pl.BlockSpec((tile, tile), lambda l, i, k: (i, k)),   # A_hat
                pl.BlockSpec((tile, f_in), _x_index_map),             # X (streamed)
                pl.BlockSpec((f_in, f), const),                       # W1
                pl.BlockSpec((f, f), const),                          # W2
                pl.BlockSpec((1, f), const),                          # b1
                pl.BlockSpec((1, f), const),                          # b2
            ],
            # Layer 0: output index pinned at block 0 (the buffer is zero
            # filled in-kernel so any flush is benign).  Layer 1: follows i.
            out_specs=pl.BlockSpec((tile, f), lambda l, i, k: (l * i, 0)),
            scratch_shapes=[
                pltpu.VMEM((n_p, f), jnp.bfloat16),   # T = In @ W (per layer)
                pltpu.VMEM((n_p, f), jnp.bfloat16),   # H = relu(layer-0 out)
                pltpu.VMEM((tile, f), jnp.float32),   # f32 accumulator
            ],
        ),
        compiler_params=pltpu.CompilerParams(
            # Row axis must stay sequential in the fused kernel: layer-1 rows
            # read ALL of H from this core's VMEM scratch.  Use
            # fuse_layers=False on multi-TensorCore chips (v7x).
            dimension_semantics=("arbitrary", "arbitrary", "arbitrary"),
            vmem_limit_bytes=_vmem_limit(budget),
        ),
    )(a_p, x_p, w1_p, w2_p, b1_p, b2_p)

    return out_p[:n, :c_out]


# ----------------------------------------------------------------------------
# Split path: one aggregation kernel per layer, row-tile axis "parallel"
# (engages both TensorCores on v7x).  T = In @ W is a plain XLA GEMM.
# ----------------------------------------------------------------------------
def _gcn_aggregate_kernel(a_ref, t_ref, b_ref, o_ref, acc_ref, *, tile, relu):
    k = pl.program_id(1)
    nk = pl.num_programs(1)
    kk = pl.multiple_of(k * tile, tile)

    @pl.when(k == 0)
    def _():
        acc_ref[...] = jnp.zeros_like(acc_ref)

    acc_ref[...] += jnp.dot(
        a_ref[...], t_ref[pl.ds(kk, tile), :], preferred_element_type=jnp.float32
    )

    @pl.when(k == nk - 1)
    def _():
        r = acc_ref[...] + b_ref[...]
        if relu:
            r = jnp.maximum(r, 0.0)
        o_ref[...] = r.astype(o_ref.dtype)


def _gcn_aggregate(a_p, t_p, b_p, *, tile, relu, out_dtype):
    n_p = a_p.shape[0]
    f = t_p.shape[1]
    nt = n_p // tile

    budget = (
        2 * tile * tile * 2                               # A tiles
        + 2 * n_p * f * 2                                 # resident T (bf16)
        + 2 * 8 * f * 4                                   # bias
        + 2 * tile * f * jnp.dtype(out_dtype).itemsize    # output tiles
        + tile * f * 4                                    # f32 accumulator
    )

    const = lambda i, k: (0, 0)
    return pl.pallas_call(
        functools.partial(_gcn_aggregate_kernel, tile=tile, relu=relu),
        out_shape=jax.ShapeDtypeStruct((n_p, f), out_dtype),
        grid_spec=pltpu.PrefetchScalarGridSpec(
            num_scalar_prefetch=0,
            grid=(nt, nt),
            in_specs=[
                pl.BlockSpec((tile, tile), lambda i, k: (i, k)),   # A_hat
                pl.BlockSpec((n_p, f), const),                     # T (resident)
                pl.BlockSpec((1, f), const),                       # bias
            ],
            out_specs=pl.BlockSpec((tile, f), lambda i, k: (i, 0)),
            scratch_shapes=[pltpu.VMEM((tile, f), jnp.float32)],
        ),
        compiler_params=pltpu.CompilerParams(
            # Row tiles are independent -> shard across TensorCores (v7x).
            dimension_semantics=("parallel", "arbitrary"),
            vmem_limit_bytes=_vmem_limit(budget),
        ),
    )(a_p, t_p, b_p)


def split_gcn_forward(x, a_hat, params, *, tile):
    n, c_in = x.shape
    c_hid = params["w1"].shape[1]
    c_out = params["w2"].shape[1]

    f_in = _round_up(c_in, LANE)
    f = max(_round_up(c_hid, LANE), _round_up(c_out, LANE))
    n_p = _round_up(max(n, tile), tile)

    bf = jnp.bfloat16
    a_p = _pad2(a_hat, n_p, n_p).astype(bf)
    x_p = _pad2(x, n_p, f_in).astype(bf)
    w1_p = _pad2(params["w1"], f_in, f).astype(bf)
    w2_p = _pad2(params["w2"], f, f).astype(bf)
    b1_p = _pad2(params["b1"], 1, f).astype(jnp.float32)
    b2_p = _pad2(params["b2"], 1, f).astype(jnp.float32)

    # Per-layer feature projections as plain XLA GEMMs (tiny vs. the O(N^2)
    # aggregation); H round-trips HBM once (bf16, negligible traffic).
    t0 = jnp.dot(x_p, w1_p, preferred_element_type=jnp.float32).astype(bf)
    h = _gcn_aggregate(a_p, t0, b1_p, tile=tile, relu=True, out_dtype=bf)
    t1 = jnp.dot(h, w2_p, preferred_element_type=jnp.float32).astype(bf)
    out_p = _gcn_aggregate(a_p, t1, b2_p, tile=tile, relu=False,
                           out_dtype=jnp.float32)
    return out_p[:n, :c_out]


# ----------------------------------------------------------------------------
# Top-level forward
# ----------------------------------------------------------------------------
@functools.partial(jax.jit, static_argnames=("tile", "fuse_layers"))
def transmutation_gnn_forward(x, a_hat, params, tile=512, fuse_layers=True):
    n = x.shape[0]
    # Clamp tile for small graphs; keep it a multiple of the lane width.
    tile = min(_round_up(tile, LANE), _round_up(n, LANE))
    tile = max(tile, LANE)
    if fuse_layers:
        return fused_gcn_forward(x, a_hat, params, tile=tile)
    return split_gcn_forward(x, a_hat, params, tile=tile)


# ----------------------------------------------------------------------------
# Glue: symmetric-normalized adjacency with self-loops (PyG GCN norm)
# ----------------------------------------------------------------------------
def build_norm_adj(edge_index, num_nodes):
    src = edge_index[0]
    dst = edge_index[1]
    loops = jnp.arange(num_nodes, dtype=edge_index.dtype)
    src = jnp.concatenate([src, loops])
    dst = jnp.concatenate([dst, loops])
    # message flows src -> dst; aggregation at dst (row index)
    a = jnp.zeros((num_nodes, num_nodes), jnp.float32).at[dst, src].add(1.0)
    deg = a.sum(axis=1)
    dinv = jnp.where(deg > 0.0, jax.lax.rsqrt(deg), 0.0)
    return a * dinv[:, None] * dinv[None, :]


# ----------------------------------------------------------------------------
# Parameter init (glorot-uniform weights, zero bias — deterministic)
# ----------------------------------------------------------------------------
def glorot(key, fan_in, fan_out):
    limit = jnp.sqrt(6.0 / (fan_in + fan_out))
    return jax.random.uniform(key, (fan_in, fan_out), jnp.float32, -limit, limit)


def init_params(key, in_channels, hidden_channels, out_channels):
    k1, k2 = jax.random.split(key)
    return {
        "w1": glorot(k1, in_channels, hidden_channels),
        "b1": jnp.zeros((1, hidden_channels), jnp.float32),
        "w2": glorot(k2, hidden_channels, out_channels),
        "b2": jnp.zeros((1, out_channels), jnp.float32),
    }


# Pure-JAX reference with the same bf16-operand / f32-accumulate arithmetic
def reference_forward_bf16(x, a_hat, params):
    bf = jnp.bfloat16
    a = a_hat.astype(bf)
    t0 = jnp.dot(x.astype(bf), params["w1"].astype(bf),
                 preferred_element_type=jnp.float32)
    h = jnp.maximum(
        jnp.dot(a, t0.astype(bf), preferred_element_type=jnp.float32)
        + params["b1"], 0.0)
    t1 = jnp.dot(h.astype(bf), params["w2"].astype(bf),
                 preferred_element_type=jnp.float32)
    return jnp.dot(a, t1.astype(bf), preferred_element_type=jnp.float32) + params["b2"]


if __name__ == "__main__":
    key = jax.random.PRNGKey(0)

    def make_case(n, c_in, c_hid, c_out, case_key):
        kx, kp = jax.random.split(case_key)
        x = jax.random.normal(kx, (n, c_in), jnp.float32)
        # deterministic undirected ring graph (both directions)
        s = jnp.arange(n, dtype=jnp.int32)
        d = (s + 1) % n
        edge_index = jnp.stack(
            [jnp.concatenate([s, d]), jnp.concatenate([d, s])], axis=0)
        a_hat = build_norm_adj(edge_index, n)
        params = init_params(kp, c_in, c_hid, c_out)
        return x, a_hat, params

    k1, k2 = jax.random.split(key)

    # Case 1: tiny graph (N=8, in=16, hidden=32, out=8), single-tile grid,
    # fused default path.
    x, a_hat, params = make_case(8, 16, 32, 8, k1)
    out = transmutation_gnn_forward(x, a_hat, params)
    jax.block_until_ready(out)
    ref = reference_forward_bf16(x, a_hat, params)
    assert out.shape == (8, 8)
    assert jnp.allclose(out, ref, atol=5e-3, rtol=5e-3), float(
        jnp.max(jnp.abs(out - ref)))

    # Case 2: multi-tile grid (N=300, tile=128 -> 3x3 reduction tiles),
    # exercising distributed T + streamed X, on both the fused path and the
    # two-call "parallel rows" path (v7x layout).
    x, a_hat, params = make_case(300, 16, 32, 8, k2)
    ref = reference_forward_bf16(x, a_hat, params)
    for fuse in (True, False):
        out = transmutation_gnn_forward(x, a_hat, params, tile=128,
                                        fuse_layers=fuse)
        jax.block_until_ready(out)
        assert out.shape == (300, 8)
        assert jnp.allclose(out, ref, atol=5e-3, rtol=5e-3), (
            fuse, float(jnp.max(jnp.abs(out - ref))))

    print("KERNEL_OK")
</pallas_src>

<mosaic_0001>
module attributes {stable_mosaic.version = 11 : i64} {
  func.func @_fused_gcn_kernel(%arg0: i32, %arg1: i32, %arg2: i32, %arg3: memref<128x128xbf16, #tpu.memory_space<vmem>>, %arg4: memref<128x128xbf16, #tpu.memory_space<vmem>>, %arg5: memref<128x128xbf16, #tpu.memory_space<vmem>>, %arg6: memref<128x128xbf16, #tpu.memory_space<vmem>>, %arg7: memref<1x128xf32, #tpu.memory_space<vmem>>, %arg8: memref<1x128xf32, #tpu.memory_space<vmem>>, %arg9: memref<128x128xf32, #tpu.memory_space<vmem>>, %arg10: memref<128x128xbf16, #tpu.memory_space<vmem>>, %arg11: memref<128x128xbf16, #tpu.memory_space<vmem>>, %arg12: memref<128x128xf32, #tpu.memory_space<vmem>>) attributes {dimension_semantics = [#tpu.dimension_semantics<arbitrary>, #tpu.dimension_semantics<arbitrary>, #tpu.dimension_semantics<arbitrary>], iteration_bounds = array<i64: 2, 1, 1>, scalar_prefetch = 0 : i64, scratch_operands = 3 : i64, tpu.core_type = #tpu.core_type<tc>, window_params = [{transform_indices = @transform_0, window_bounds = array<i64: 128, 128>}, {transform_indices = @transform_1, window_bounds = array<i64: 128, 128>}, {pipeline_mode = #tpu.pipeline_mode<synchronous>, transform_indices = @transform_2, window_bounds = array<i64: 128, 128>}, {pipeline_mode = #tpu.pipeline_mode<synchronous>, transform_indices = @transform_3, window_bounds = array<i64: 128, 128>}, {pipeline_mode = #tpu.pipeline_mode<synchronous>, transform_indices = @transform_4, window_bounds = array<i64: 1, 128>}, {pipeline_mode = #tpu.pipeline_mode<synchronous>, transform_indices = @transform_5, window_bounds = array<i64: 1, 128>}, {transform_indices = @transform_6, window_bounds = array<i64: 128, 128>}]} {
    %c128_i32 = arith.constant 128 : i32
    %0 = arith.muli %arg2, %c128_i32 : i32
    %1 = tpu.assume_multiple %0, 128 : i32
    %c0_i32 = arith.constant 0 : i32
    %2 = arith.cmpi eq, %arg0, %c0_i32 : i32
    %c0_i32_0 = arith.constant 0 : i32
    %3 = arith.cmpi eq, %arg1, %c0_i32_0 : i32
    %4 = arith.andi %2, %3 : i1
    %c0_i32_1 = arith.constant 0 : i32
    %5 = arith.cmpi eq, %arg2, %c0_i32_1 : i32
    %6 = arith.andi %4, %5 : i1
    %7 = arith.extui %6 : i1 to i32
    %c0_i32_2 = arith.constant 0 : i32
    %8 = arith.cmpi ne, %7, %c0_i32_2 : i32
    scf.if %8 {
      %cst_22 = arith.constant 0.000000e+00 : f32
      %39 = vector.broadcast %cst_22 : f32 to vector<128x128xf32>
      %c0_23 = arith.constant 0 : index
      %c0_24 = arith.constant 0 : index
      %40 = vector.load %arg9[%c0_23, %c0_24] : memref<128x128xf32, #tpu.memory_space<vmem>>, vector<128x128xf32>
      tpu.vector_store %arg9[%c0_23, %c0_24], %39 {strides = array<i32>} : memref<128x128xf32, #tpu.memory_space<vmem>>, vector<128x128xf32>,
    } else {
    }
    %c0_i32_3 = arith.constant 0 : i32
    %9 = arith.cmpi eq, %arg0, %c0_i32_3 : i32
    %c0_i32_4 = arith.constant 0 : i32
    %10 = arith.cmpi eq, %arg1, %c0_i32_4 : i32
    %11 = arith.andi %9, %10 : i1
    %12 = arith.extui %11 : i1 to i32
    %c0_i32_5 = arith.constant 0 : i32
    %13 = arith.cmpi ne, %12, %c0_i32_5 : i32
    scf.if %13 {
      %c0_22 = arith.constant 0 : index
      %c0_23 = arith.constant 0 : index
      %39 = vector.load %arg4[%c0_22, %c0_23] : memref<128x128xbf16, #tpu.memory_space<vmem>>, vector<128x128xbf16>
      %c0_24 = arith.constant 0 : index
      %c0_25 = arith.constant 0 : index
      %40 = vector.load %arg5[%c0_24, %c0_25] : memref<128x128xbf16, #tpu.memory_space<vmem>>, vector<128x128xbf16>
      %cst_26 = arith.constant dense<0.000000e+00> : vector<128x128xf32>
      %41 = tpu.matmul %39, %40, %cst_26 {dimension_numbers = #tpu.dot_dimension_numbers<[1], [0], [0], [1], [0, 0, 1, 1], [], []>} : vector<128x128xbf16>, vector<128x128xbf16>, vector<128x128xf32> -> vector<128x128xf32>
      %42 = arith.truncf %41 : vector<128x128xf32> to vector<128x128xbf16>
      %43 = arith.index_cast %1 : i32 to index
      %c0_27 = arith.constant 0 : index
      %44 = vector.load %arg10[%43, %c0_27] : memref<128x128xbf16, #tpu.memory_space<vmem>>, vector<128x128xbf16>
      tpu.vector_store %arg10[%43, %c0_27], %42 {strides = array<i32>} : memref<128x128xbf16, #tpu.memory_space<vmem>>, vector<128x128xbf16>,
    } else {
    }
    %c1_i32 = arith.constant 1 : i32
    %14 = arith.cmpi eq, %arg0, %c1_i32 : i32
    %c0_i32_6 = arith.constant 0 : i32
    %15 = arith.cmpi eq, %arg1, %c0_i32_6 : i32
    %16 = arith.andi %14, %15 : i1
    %17 = arith.extui %16 : i1 to i32
    %c0_i32_7 = arith.constant 0 : i32
    %18 = arith.cmpi ne, %17, %c0_i32_7 : i32
    scf.if %18 {
      %39 = arith.index_cast %1 : i32 to index
      %c0_22 = arith.constant 0 : index
      %40 = vector.load %arg11[%39, %c0_22] : memref<128x128xbf16, #tpu.memory_space<vmem>>, vector<128x128xbf16>
      %c0_23 = arith.constant 0 : index
      %c0_24 = arith.constant 0 : index
      %41 = vector.load %arg6[%c0_23, %c0_24] : memref<128x128xbf16, #tpu.memory_space<vmem>>, vector<128x128xbf16>
      %cst_25 = arith.constant dense<0.000000e+00> : vector<128x128xf32>
      %42 = tpu.matmul %40, %41, %cst_25 {dimension_numbers = #tpu.dot_dimension_numbers<[1], [0], [0], [1], [0, 0, 1, 1], [], []>} : vector<128x128xbf16>, vector<128x128xbf16>, vector<128x128xf32> -> vector<128x128xf32>
      %43 = arith.truncf %42 : vector<128x128xf32> to vector<128x128xbf16>
      %44 = arith.index_cast %1 : i32 to index
      %c0_26 = arith.constant 0 : index
      %45 = vector.load %arg10[%44, %c0_26] : memref<128x128xbf16, #tpu.memory_space<vmem>>, vector<128x128xbf16>
      tpu.vector_store %arg10[%44, %c0_26], %43 {strides = array<i32>} : memref<128x128xbf16, #tpu.memory_space<vmem>>, vector<128x128xbf16>,
    } else {
    }
    %c0_i32_8 = arith.constant 0 : i32
    %19 = arith.cmpi eq, %arg2, %c0_i32_8 : i32
    %20 = arith.extui %19 : i1 to i32
    %c0_i32_9 = arith.constant 0 : i32
    %21 = arith.cmpi ne, %20, %c0_i32_9 : i32
    scf.if %21 {
      %cst_22 = arith.constant 0.000000e+00 : f32
      %39 = vector.broadcast %cst_22 : f32 to vector<128x128xf32>
      %c0_23 = arith.constant 0 : index
      %c0_24 = arith.constant 0 : index
      %40 = vector.load %arg12[%c0_23, %c0_24] : memref<128x128xf32, #tpu.memory_space<vmem>>, vector<128x128xf32>
      tpu.vector_store %arg12[%c0_23, %c0_24], %39 {strides = array<i32>} : memref<128x128xf32, #tpu.memory_space<vmem>>, vector<128x128xf32>,
    } else {
    }
    %c0 = arith.constant 0 : index
    %c0_10 = arith.constant 0 : index
    %22 = vector.load %arg12[%c0, %c0_10] : memref<128x128xf32, #tpu.memory_space<vmem>>, vector<128x128xf32>
    %c0_11 = arith.constant 0 : index
    %c0_12 = arith.constant 0 : index
    %23 = vector.load %arg3[%c0_11, %c0_12] : memref<128x128xbf16, #tpu.memory_space<vmem>>, vector<128x128xbf16>
    %24 = arith.index_cast %1 : i32 to index
    %c0_13 = arith.constant 0 : index
    %25 = vector.load %arg10[%24, %c0_13] : memref<128x128xbf16, #tpu.memory_space<vmem>>, vector<128x128xbf16>
    %cst = arith.constant dense<0.000000e+00> : vector<128x128xf32>
    %26 = tpu.matmul %23, %25, %cst {dimension_numbers = #tpu.dot_dimension_numbers<[1], [0], [0], [1], [0, 0, 1, 1], [], []>} : vector<128x128xbf16>, vector<128x128xbf16>, vector<128x128xf32> -> vector<128x128xf32>
    %27 = arith.addf %22, %26 : vector<128x128xf32>
    %c0_14 = arith.constant 0 : index
    %c0_15 = arith.constant 0 : index
    %28 = vector.load %arg12[%c0_14, %c0_15] : memref<128x128xf32, #tpu.memory_space<vmem>>, vector<128x128xf32>
    tpu.vector_store %arg12[%c0_14, %c0_15], %27 {strides = array<i32>} : memref<128x128xf32, #tpu.memory_space<vmem>>, vector<128x128xf32>,
    %c0_i32_16 = arith.constant 0 : i32
    %29 = arith.cmpi eq, %arg2, %c0_i32_16 : i32
    %c0_i32_17 = arith.constant 0 : i32
    %30 = arith.cmpi eq, %arg0, %c0_i32_17 : i32
    %31 = arith.andi %29, %30 : i1
    %32 = arith.extui %31 : i1 to i32
    %c0_i32_18 = arith.constant 0 : i32
    %33 = arith.cmpi ne, %32, %c0_i32_18 : i32
    scf.if %33 {
      %c128_i32_22 = arith.constant 128 : i32
      %39 = arith.muli %arg1, %c128_i32_22 : i32
      %40 = tpu.assume_multiple %39, 128 : i32
      %c0_23 = arith.constant 0 : index
      %c0_24 = arith.constant 0 : index
      %41 = vector.load %arg12[%c0_23, %c0_24] : memref<128x128xf32, #tpu.memory_space<vmem>>, vector<128x128xf32>
      %c0_25 = arith.constant 0 : index
      %c0_26 = arith.constant 0 : index
      %42 = vector.load %arg7[%c0_25, %c0_26] : memref<1x128xf32, #tpu.memory_space<vmem>>, vector<1x128xf32>
      %43 = vector.broadcast %42 : vector<1x128xf32> to vector<128x128xf32>
      %44 = arith.addf %41, %43 : vector<128x128xf32>
      %cst_27 = arith.constant 0.000000e+00 : f32
      %45 = vector.broadcast %cst_27 : f32 to vector<128x128xf32>
      %46 = arith.maximumf %44, %45 : vector<128x128xf32>
      %47 = arith.truncf %46 : vector<128x128xf32> to vector<128x128xbf16>
      %48 = arith.index_cast %40 : i32 to index
      %c0_28 = arith.constant 0 : index
      %49 = vector.load %arg11[%48, %c0_28] : memref<128x128xbf16, #tpu.memory_space<vmem>>, vector<128x128xbf16>
      tpu.vector_store %arg11[%48, %c0_28], %47 {strides = array<i32>} : memref<128x128xbf16, #tpu.memory_space<vmem>>, vector<128x128xbf16>,
    } else {
    }
    %c0_i32_19 = arith.constant 0 : i32
    %34 = arith.cmpi eq, %arg2, %c0_i32_19 : i32
    %c1_i32_20 = arith.constant 1 : i32
    %35 = arith.cmpi eq, %arg0, %c1_i32_20 : i32
    %36 = arith.andi %34, %35 : i1
    %37 = arith.extui %36 : i1 to i32
    %c0_i32_21 = arith.constant 0 : i32
    %38 = arith.cmpi ne, %37, %c0_i32_21 : i32
    scf.if %38 {
      %c0_22 = arith.constant 0 : index
      %c0_23 = arith.constant 0 : index
      %39 = vector.load %arg12[%c0_22, %c0_23] : memref<128x128xf32, #tpu.memory_space<vmem>>, vector<128x128xf32>
      %c0_24 = arith.constant 0 : index
      %c0_25 = arith.constant 0 : index
      %40 = vector.load %arg8[%c0_24, %c0_25] : memref<1x128xf32, #tpu.memory_space<vmem>>, vector<1x128xf32>
      %41 = vector.broadcast %40 : vector<1x128xf32> to vector<128x128xf32>
      %42 = arith.addf %39, %41 : vector<128x128xf32>
      %c0_26 = arith.constant 0 : index
      %c0_27 = arith.constant 0 : index
      %43 = vector.load %arg9[%c0_26, %c0_27] : memref<128x128xf32, #tpu.memory_space<vmem>>, vector<128x128xf32>
      tpu.vector_store %arg9[%c0_26, %c0_27], %42 {strides = array<i32>} : memref<128x128xf32, #tpu.memory_space<vmem>>, vector<128x128xf32>,
    } else {
    }
    return
  }
  func.func @transform_0(%arg0: i32, %arg1: i32, %arg2: i32) -> (i32, i32) {
    %c0_i32 = arith.constant 0 : i32
    return %arg1, %arg2 : i32, i32
  }
  func.func @transform_1(%arg0: i32, %arg1: i32, %arg2: i32) -> (i32, i32) {
    %c1_i32 = arith.constant 1 : i32
    %0 = arith.minsi %arg1, %c1_i32 : i32
    %c1_i32_0 = arith.constant 1 : i32
    %1 = arith.subi %c1_i32_0, %0 : i32
    %c1_i32_1 = arith.constant 1 : i32
    %2 = arith.subi %c1_i32_1, %arg0 : i32
    %3 = arith.muli %1, %2 : i32
    %4 = arith.muli %arg2, %3 : i32
    %c0_i32 = arith.constant 0 : i32
    %c0_i32_2 = arith.constant 0 : i32
    return %4, %c0_i32 : i32, i32
  }
  func.func @transform_2(%arg0: i32, %arg1: i32, %arg2: i32) -> (i32, i32) {
    %c0_i32 = arith.constant 0 : i32
    %c0_i32_0 = arith.constant 0 : i32
    %c0_i32_1 = arith.constant 0 : i32
    return %c0_i32, %c0_i32_0 : i32, i32
  }
  func.func @transform_3(%arg0: i32, %arg1: i32, %arg2: i32) -> (i32, i32) {
    %c0_i32 = arith.constant 0 : i32
    %c0_i32_0 = arith.constant 0 : i32
    %c0_i32_1 = arith.constant 0 : i32
    return %c0_i32, %c0_i32_0 : i32, i32
  }
  func.func @transform_4(%arg0: i32, %arg1: i32, %arg2: i32) -> (i32, i32) {
    %c0_i32 = arith.constant 0 : i32
    %c0_i32_0 = arith.constant 0 : i32
    %c0_i32_1 = arith.constant 0 : i32
    return %c0_i32, %c0_i32_0 : i32, i32
  }
  func.func @transform_5(%arg0: i32, %arg1: i32, %arg2: i32) -> (i32, i32) {
    %c0_i32 = arith.constant 0 : i32
    %c0_i32_0 = arith.constant 0 : i32
    %c0_i32_1 = arith.constant 0 : i32
    return %c0_i32, %c0_i32_0 : i32, i32
  }
  func.func @transform_6(%arg0: i32, %arg1: i32, %arg2: i32) -> (i32, i32) {
    %0 = arith.muli %arg0, %arg1 : i32
    %c0_i32 = arith.constant 0 : i32
    %c0_i32_0 = arith.constant 0 : i32
    return %0, %c0_i32 : i32, i32
  }
}

</mosaic_0001>

<llo_original>
// kernel: transmutation_gnn_forward.1
$region0: #{transmutation_gnn_forward.1}
  #allocation0 [shape = 'u32[]', space=smem, size = 0x4, offset = 0x4, fixed_abs, tag = 'smem constant byte address 0x4 - core index']
  #allocation1 [shape = 'u32[144,128]{1,0:T(1,128)}', space=vmem, size = 0x12000, scoped, tag = 'internal scratch']
  #allocation2 [shape = 'bf16[128,128]{1,0:T(16,128)(2,1)}', space=vmem, size = 0x8000, scoped, tag = 'scratch operand']
  #allocation3 [shape = 'bf16[128,128]{1,0:T(16,128)(2,1)}', space=vmem, size = 0x8000, scoped, tag = 'scratch operand']
  #allocation4 [shape = 'f32[128,128]{1,0:T(8,128)}', space=vmem, size = 0x10000, scoped, tag = 'scratch operand']
  %s0 = inlined_call_operand.vmem [shape: bf16[128,128], index: 0, kind: input, shape index: {}]
  %s1 = inlined_call_operand.vmem [shape: bf16[128,128], index: 1, kind: input, shape index: {}]
  %s2 = inlined_call_operand.vmem [shape: bf16[128,128], index: 2, kind: input, shape index: {}]
  %s3 = inlined_call_operand.vmem [shape: bf16[128,128], index: 3, kind: input, shape index: {}]
  %s4 = inlined_call_operand.vmem [shape: f32[1,128], index: 4, kind: input, shape index: {}]
  %s5 = inlined_call_operand.vmem [shape: f32[1,128], index: 5, kind: input, shape index: {}]
  %s6 = inlined_call_operand.vmem [shape: f32[128,128], index: 6, kind: output, shape index: {}]
  %s7 = sld [smem:[#allocation0]]
  $region81: #{transmutation_gnn_forward.1} parent=0
    _
  %s9 = ssub.s32 1, %s7
  %s10 = scalar_select 0, %s9, %s7
  loop: start=0, step=1, limit=4
  $region2: #{transmutation_gnn_forward.1} parent=0 // loop_pre_header
    _
  $region3: #{transmutation_gnn_forward.1} parent=0 // loop_header
    %s12 = sphi 0, %s16
    %p13 = scmp.ge.s32.totalorder %s12, 4
    %s19 = sphi 0, %s38
    %s20 = sphi 0, %s34
    %s21 = sphi 0, %s30
    %s22 = sphi 0, %s19
    %s23 = sphi 0, %s20
    %s24 = sphi 0, %s21
    %s25 = sphi 0, %s22
    %s26 = sphi 0, %s23
    %s27 = sphi 0, %s24
    %s43 = sphi 0, %s45
    %s46 = sphi 0, %s43
    %s47 = sphi 0, %s46
    %s63 = sphi 0, %s47
    %s81 = sphi 0, %s83
    %s84 = sphi 0, %s81
    %s85 = sphi 0, %s84
    %s101 = sphi 0, %s85
    %s105 = sphi 0, %s105
    %s107 = sphi 0, %s105
    %s108 = sphi 0, %s107
    %s122 = sphi 0, %s108
    %s126 = sphi 0, %s126
    %s128 = sphi 0, %s126
    %s129 = sphi 0, %s128
    %s143 = sphi 0, %s129
    %s147 = sphi 0, %s147
    %s149 = sphi 0, %s147
    %s150 = sphi 0, %s149
    %s164 = sphi 0, %s150
    %s168 = sphi 0, %s168
    %s170 = sphi 0, %s168
    %s171 = sphi 0, %s170
    %s185 = sphi 0, %s171
    %s193 = sphi 0, %s195
    %s196 = sphi 0, %s193
    %s197 = sphi 0, %s196
    %s213 = sphi 0, %s197
  $region4: #{transmutation_gnn_forward.1} parent=0 // loop_header_branch
    %15 = sbr.rel (%p13) target = $region8
  $region5: #{transmutation_gnn_forward.1} parent=0 // loop_body
    %s17 = ssub.s32 %s12, 1
    %s18 = ssub.s32 %s12, 2
    %s28 = sadd.s32 1, %s21
    %p29 = scmp.ge.s32.totalorder %s28, 1
    %s30 = scalar_select %p29, 0, %s28
    %s31 = sadd.s32 1, %s20
    %s32 = scalar_select %p29, %s31, %s20
    %p33 = scmp.ge.s32.totalorder %s32, 1
    %s34 = scalar_select %p33, 0, %s32
    %s35 = sadd.s32 1, %s19
    %s36 = scalar_select %p33, %s35, %s19
    %p37 = scmp.ge.s32.totalorder %s36, 2
    %s38 = scalar_select %p37, 0, %s36
    %s39 = ssub.s32 %s20, %s34
    %s40 = ssub.s32 %s21, %s30
    %s41 = sor.u32 %s39, %s40
    %p42 = scmp.eq.s32.totalorder %s41, 0
    %s44 = sadd.s32 %s43, 1
    %s45 = scalar_select %p42, %s43, %s44
    %p48 = pneg %p42
    %p49 = scmp.eq.s32.totalorder %s12, 1
    %p50 = por %p48, %p49
    %p51 = scmp.ne.s32.totalorder %s43, %s46
    %p52 = scmp.eq.s32.totalorder %s12, 0
    %p53 = por %p51, %p52
    %p54 = scmp.ne.s32.totalorder %s43, %s46
    %p55 = scmp.eq.s32.totalorder %s17, 1
    %p56 = por %p54, %p55
    %p57 = scmp.ne.s32.totalorder %s46, %s47
    %p58 = scmp.eq.s32.totalorder %s17, 0
    %p59 = por %p57, %p58
    %p60 = scmp.ne.s32.totalorder %s46, %s47
    %p61 = scmp.eq.s32.totalorder %s18, 1
    %p62 = por %p60, %p61
    %p64 = scmp.ne.s32.totalorder %s47, %s63
    %p65 = scmp.eq.s32.totalorder %s18, 0
    %p66 = por %p64, %p65
    %p67 = scmp.lt.s32.totalorder %s20, 1
    %s68 = scalar_select %p67, %s20, 1
    %s69 = ssub.s32 1, %s68
    %s70 = ssub.s32 1, %s19
    %s71 = smul.u32 %s69, %s70
    %s72 = smul.u32 %s21, %s71
    %p73 = scmp.lt.s32.totalorder %s34, 1
    %s74 = scalar_select %p73, %s34, 1
    %s75 = ssub.s32 1, %s74
    %s76 = ssub.s32 1, %s38
    %s77 = smul.u32 %s75, %s76
    %s78 = smul.u32 %s30, %s77
    %s79 = ssub.s32 %s72, %s78
    %p80 = scmp.eq.s32.totalorder %s79, 0
    %s82 = sadd.s32 %s81, 1
    %s83 = scalar_select %p80, %s81, %s82
    %p86 = pneg %p80
    %p87 = scmp.eq.s32.totalorder %s12, 1
    %p88 = por %p86, %p87
    %p89 = scmp.ne.s32.totalorder %s81, %s84
    %p90 = scmp.eq.s32.totalorder %s12, 0
    %p91 = por %p89, %p90
    %p92 = scmp.ne.s32.totalorder %s81, %s84
    %p93 = scmp.eq.s32.totalorder %s17, 1
    %p94 = por %p92, %p93
    %p95 = scmp.ne.s32.totalorder %s84, %s85
    %p96 = scmp.eq.s32.totalorder %s17, 0
    %p97 = por %p95, %p96
    %p98 = scmp.ne.s32.totalorder %s84, %s85
    %p99 = scmp.eq.s32.totalorder %s18, 1
    %p100 = por %p98, %p99
    %p102 = scmp.ne.s32.totalorder %s85, %s101
    %p103 = scmp.eq.s32.totalorder %s18, 0
    %p104 = por %p102, %p103
    %s106 = sadd.s32 %s105, 1
    %p109 = scmp.eq.s32.totalorder %s12, 1
    %p110 = scmp.ne.s32.totalorder %s105, %s107
    %p111 = scmp.eq.s32.totalorder %s12, 0
    %p112 = por %p110, %p111
    %p113 = scmp.ne.s32.totalorder %s105, %s107
    %p114 = scmp.eq.s32.totalorder %s17, 1
    %p115 = por %p113, %p114
    %p116 = scmp.ne.s32.totalorder %s107, %s108
    %p117 = scmp.eq.s32.totalorder %s17, 0
    %p118 = por %p116, %p117
    %p119 = scmp.ne.s32.totalorder %s107, %s108
    %p120 = scmp.eq.s32.totalorder %s18, 1
    %p121 = por %p119, %p120
    %p123 = scmp.ne.s32.totalorder %s108, %s122
    %p124 = scmp.eq.s32.totalorder %s18, 0
    %p125 = por %p123, %p124
    %s127 = sadd.s32 %s126, 1
    %p130 = scmp.eq.s32.totalorder %s12, 1
    %p131 = scmp.ne.s32.totalorder %s126, %s128
    %p132 = scmp.eq.s32.totalorder %s12, 0
    %p133 = por %p131, %p132
    %p134 = scmp.ne.s32.totalorder %s126, %s128
    %p135 = scmp.eq.s32.totalorder %s17, 1
    %p136 = por %p134, %p135
    %p137 = scmp.ne.s32.totalorder %s128, %s129
    %p138 = scmp.eq.s32.totalorder %s17, 0
    %p139 = por %p137, %p138
    %p140 = scmp.ne.s32.totalorder %s128, %s129
    %p141 = scmp.eq.s32.totalorder %s18, 1
    %p142 = por %p140, %p141
    %p144 = scmp.ne.s32.totalorder %s129, %s143
    %p145 = scmp.eq.s32.totalorder %s18, 0
    %p146 = por %p144, %p145
    %s148 = sadd.s32 %s147, 1
    %p151 = scmp.eq.s32.totalorder %s12, 1
    %p152 = scmp.ne.s32.totalorder %s147, %s149
    %p153 = scmp.eq.s32.totalorder %s12, 0
    %p154 = por %p152, %p153
    %p155 = scmp.ne.s32.totalorder %s147, %s149
    %p156 = scmp.eq.s32.totalorder %s17, 1
    %p157 = por %p155, %p156
    %p158 = scmp.ne.s32.totalorder %s149, %s150
    %p159 = scmp.eq.s32.totalorder %s17, 0
    %p160 = por %p158, %p159
    %p161 = scmp.ne.s32.totalorder %s149, %s150
    %p162 = scmp.eq.s32.totalorder %s18, 1
    %p163 = por %p161, %p162
    %p165 = scmp.ne.s32.totalorder %s150, %s164
    %p166 = scmp.eq.s32.totalorder %s18, 0
    %p167 = por %p165, %p166
    %s169 = sadd.s32 %s168, 1
    %p172 = scmp.eq.s32.totalorder %s12, 1
    %p173 = scmp.ne.s32.totalorder %s168, %s170
    %p174 = scmp.eq.s32.totalorder %s12, 0
    %p175 = por %p173, %p174
    %p176 = scmp.ne.s32.totalorder %s168, %s170
    %p177 = scmp.eq.s32.totalorder %s17, 1
    %p178 = por %p176, %p177
    %p179 = scmp.ne.s32.totalorder %s170, %s171
    %p180 = scmp.eq.s32.totalorder %s17, 0
    %p181 = por %p179, %p180
    %p182 = scmp.ne.s32.totalorder %s170, %s171
    %p183 = scmp.eq.s32.totalorder %s18, 1
    %p184 = por %p182, %p183
    %p186 = scmp.ne.s32.totalorder %s171, %s185
    %p187 = scmp.eq.s32.totalorder %s18, 0
    %p188 = por %p186, %p187
    %s189 = smul.u32 %s19, %s20
    %s190 = smul.u32 %s38, %s34
    %s191 = ssub.s32 %s189, %s190
    %p192 = scmp.eq.s32.totalorder %s191, 0
    %s194 = sadd.s32 %s193, 1
    %s195 = scalar_select %p192, %s193, %s194
    %p198 = pneg %p192
    %p199 = scmp.eq.s32.totalorder %s12, 1
    %p200 = por %p198, %p199
    %p201 = scmp.ne.s32.totalorder %s193, %s196
    %p202 = scmp.eq.s32.totalorder %s12, 0
    %p203 = por %p201, %p202
    %p204 = scmp.ne.s32.totalorder %s193, %s196
    %p205 = scmp.eq.s32.totalorder %s17, 1
    %p206 = por %p204, %p205
    %p207 = scmp.ne.s32.totalorder %s196, %s197
    %p208 = scmp.eq.s32.totalorder %s17, 0
    %p209 = por %p207, %p208
    %p210 = scmp.ne.s32.totalorder %s196, %s197
    %p211 = scmp.eq.s32.totalorder %s18, 1
    %p212 = por %p210, %p211
    %p214 = scmp.ne.s32.totalorder %s197, %s213
    %p215 = scmp.eq.s32.totalorder %s18, 0
    %p216 = por %p214, %p215
    %p217 = scmp.le.s32.totalorder 1, %s12
    %p218 = scmp.lt.s32.totalorder %s12, 3
    %p219 = pnand %p217, %p218
    %p220 = pneg %p219
    // Predicated region
    $region9: #{transmutation_gnn_forward.1} parent=5 // pred_check
      _
    $region10: #{transmutation_gnn_forward.1} parent=5 // pred_check_branch
      %222 = sbr.rel (%p219) target = $region12
    $region11: #{transmutation_gnn_forward.1} parent=5 // pred_region
      %s223 = ssub.s32 %s12, 1
      // Predicated region
      $region13: #{transmutation_gnn_forward.1} parent=11 // pred_check
        %p224 = pneg %p59
      $region14: #{transmutation_gnn_forward.1} parent=11 // pred_check_branch
        %226 = sbr.rel (%p224) target = $region16
      $region15: #{transmutation_gnn_forward.1} parent=11 // pred_region
        %s227 = smul.u32 16, %s23
        %p228 = scmp.lt.s32.totalorder %s227, 15
        %s229 = scalar_select %p228, %s227, 15
        %p230 = scmp.lt.s32.totalorder %s24, 0
        %s231 = scalar_select %p230, %s24, 0
        %s232 = sadd.s32 %s231, %s229
        %s233 = smul.addr %s232, 4
        %s234 = scalar_lea.vmem %s0, %s233
        %s235 = smul.u32 16, %s23
      $region16: #{transmutation_gnn_forward.1} parent=11 // pred_fallthru
        _
      // Predicated region
      $region17: #{transmutation_gnn_forward.1} parent=11 // pred_check
        %p236 = pneg %p118
      $region18: #{transmutation_gnn_forward.1} parent=11 // pred_check_branch
        %238 = sbr.rel (%p236) target = $region20
      $region19: #{transmutation_gnn_forward.1} parent=11 // pred_region
        _
      $region20: #{transmutation_gnn_forward.1} parent=11 // pred_fallthru
        _
      // Predicated region
      $region21: #{transmutation_gnn_forward.1} parent=11 // pred_check
        %p239 = pneg %p139
      $region22: #{transmutation_gnn_forward.1} parent=11 // pred_check_branch
        %241 = sbr.rel (%p239) target = $region24
      $region23: #{transmutation_gnn_forward.1} parent=11 // pred_region
        _
      $region24: #{transmutation_gnn_forward.1} parent=11 // pred_fallthru
        _
      // Predicated region
      $region25: #{transmutation_gnn_forward.1} parent=11 // pred_check
        %p242 = pneg %p160
      $region26: #{transmutation_gnn_forward.1} parent=11 // pred_check_branch
        %244 = sbr.rel (%p242) target = $region28
      $region27: #{transmutation_gnn_forward.1} parent=11 // pred_region
        _
      $region28: #{transmutation_gnn_forward.1} parent=11 // pred_fallthru
        _
      // Predicated region
      $region29: #{transmutation_gnn_forward.1} parent=11 // pred_check
        %p245 = pneg %p181
      $region30: #{transmutation_gnn_forward.1} parent=11 // pred_check_branch
        %247 = sbr.rel (%p245) target = $region32
      $region31: #{transmutation_gnn_forward.1} parent=11 // pred_region
        _
      $region32: #{transmutation_gnn_forward.1} parent=11 // pred_fallthru
        _
    $region12: #{transmutation_gnn_forward.1} parent=5 // pred_fallthru
      _
    %p248 = scmp.lt.s32.totalorder %s12, 2
    // Predicated region
    $region33: #{transmutation_gnn_forward.1} parent=5 // pred_check
      %p249 = pneg %p248
    $region34: #{transmutation_gnn_forward.1} parent=5 // pred_check_branch
      %251 = sbr.rel (%p249) target = $region36
    $region35: #{transmutation_gnn_forward.1} parent=5 // pred_region
      // Predicated region
      $region37: #{transmutation_gnn_forward.1} parent=35 // pred_check
        %p252 = pneg %p91
      $region38: #{transmutation_gnn_forward.1} parent=35 // pred_check_branch
        %254 = sbr.rel (%p252) target = $region40
      $region39: #{transmutation_gnn_forward.1} parent=35 // pred_region
        %p255 = scmp.lt.s32.totalorder %s20, 1
        %s256 = scalar_select %p255, %s20, 1
        %s257 = ssub.s32 1, %s256
        %s258 = ssub.s32 1, %s19
        %s259 = smul.u32 %s257, %s258
        %s260 = smul.u32 %s21, %s259
        %s261 = smul.u32 16, %s260
        %p262 = scmp.lt.s32.totalorder %s261, 15
        %s263 = scalar_select %p262, %s261, 15
        %s264 = smul.addr %s263, 4
        %s265 = scalar_lea.vmem %s1, %s264
        %p266 = scmp.lt.s32.totalorder %s20, 1
        %s267 = scalar_select %p266, %s20, 1
        %s268 = ssub.s32 1, %s267
        %s269 = ssub.s32 1, %s19
        %s270 = smul.u32 %s268, %s269
        %s271 = smul.u32 %s21, %s270
        %s272 = smul.u32 16, %s271
      $region40: #{transmutation_gnn_forward.1} parent=35 // pred_fallthru
        _
    $region36: #{transmutation_gnn_forward.1} parent=5 // pred_fallthru
      _
    %p273 = scmp.le.s32.totalorder 1, %s12
    %p274 = scmp.lt.s32.totalorder %s12, 3
    %p275 = pnand %p273, %p274
    %p276 = pneg %p275
    // Predicated region
    $region41: #{transmutation_gnn_forward.1} parent=5 // pred_check
      _
    $region42: #{transmutation_gnn_forward.1} parent=5 // pred_check_branch
      %278 = sbr.rel (%p275) target = $region44
    $region43: #{transmutation_gnn_forward.1} parent=5 // pred_region
      %s279 = ssub.s32 %s12, 1
      %s280 = smul.u32 16, %s23
      %p281 = scmp.lt.s32.totalorder %s280, 15
      %s282 = scalar_select %p281, %s280, 15
      %p283 = scmp.lt.s32.totalorder %s24, 0
      %s284 = scalar_select %p283, %s24, 0
      %s285 = sadd.s32 %s284, %s282
      %s286 = smul.addr %s285, 4
      %s287 = scalar_lea.vmem %s0, %s286
      %p288 = pneg %p59
      %p289 = pneg %p56
      %p290 = scmp.lt.s32.totalorder %s23, 1
      %s291 = scalar_select %p290, %s23, 1
      %s292 = ssub.s32 1, %s291
      %s293 = ssub.s32 1, %s22
      %s294 = smul.u32 %s292, %s293
      %s295 = smul.u32 %s24, %s294
      %s296 = smul.u32 16, %s295
      %p297 = scmp.lt.s32.totalorder %s296, 15
      %s298 = scalar_select %p297, %s296, 15
      %s299 = smul.addr %s298, 4
      %s300 = scalar_lea.vmem %s1, %s299
      %p301 = pneg %p97
      %p302 = pneg %p94
      %p303 = pneg %p118
      %p304 = pneg %p115
      %p305 = pneg %p139
      %p306 = pneg %p136
      %p307 = pneg %p160
      %p308 = pneg %p157
      %p309 = pneg %p181
      %p310 = pneg %p178
      %p311 = pneg %p209
      %p312 = pneg %p206
      %s313 = smul.u32 %s22, %s23
      %s314 = smul.u32 16, %s313
      %p315 = scmp.lt.s32.totalorder %s314, 15
      %s316 = scalar_select %p315, %s314, 15
      %s317 = smul.addr %s316, 8
      %s318 = scalar_lea.vmem %s6, %s317
      %s319 = smul.u32 16, %s23
      %p320 = scmp.lt.s32.totalorder %s319, 15
      %s321 = scalar_select %p320, %s319, 15
      %p322 = scmp.lt.s32.totalorder %s24, 0
      %s323 = scalar_select %p322, %s24, 0
      %s324 = sadd.s32 %s323, %s321
      %s325 = smul.addr %s324, 4
      %s326 = scalar_lea.vmem %s0, %s325
      %s327 = smul.u32 16, %s23
      %p328 = scmp.lt.s32.totalorder %s23, 1
      %s329 = scalar_select %p328, %s23, 1
      %s330 = ssub.s32 1, %s329
      %s331 = ssub.s32 1, %s22
      %s332 = smul.u32 %s330, %s331
      %s333 = smul.u32 %s24, %s332
      %s334 = smul.u32 16, %s333
      %p335 = scmp.lt.s32.totalorder %s334, 15
      %s336 = scalar_select %p335, %s334, 15
      %s337 = smul.addr %s336, 4
      %s338 = scalar_lea.vmem %s1, %s337
      %p339 = scmp.lt.s32.totalorder %s23, 1
      %s340 = scalar_select %p339, %s23, 1
      %s341 = ssub.s32 1, %s340
      %s342 = ssub.s32 1, %s22
      %s343 = smul.u32 %s341, %s342
      %s344 = smul.u32 %s24, %s343
      %s345 = smul.u32 16, %s344
      %s346 = smul.u32 %s22, %s23
      %s347 = smul.u32 16, %s346
      %p348 = scmp.lt.s32.totalorder %s347, 15
      %s349 = scalar_select %p348, %s347, 15
      %s350 = smul.addr %s349, 8
      %s351 = scalar_lea.vmem %s6, %s350
      %s352 = smul.u32 %s22, %s23
      %s353 = smul.u32 16, %s352
      %s355 = smul.u32 %s24, 128
      %p356 = scmp.eq.s32.totalorder %s22, 0
      %p357 = scmp.eq.s32.totalorder %s23, 0
      %p358 = pnand %p356, %p357
      %p359 = pneg %p358
      %p360 = scmp.eq.s32.totalorder %s24, 0
      %p361 = pnand %p359, %p360
      %p362 = pneg %p361
      // Predicated region
      $region45: #{transmutation_gnn_forward.1} parent=43 // pred_check
        _
      $region46: #{transmutation_gnn_forward.1} parent=43 // pred_check_branch
        %364 = sbr.rel (%p361) target = $region48
      $region47: #{transmutation_gnn_forward.1} parent=43 // pred_region
        %365 = vst [vmem:[%s351] sm:$0xff] 0.0
        %366 = vst [vmem:[%s351 + $0x8] sm:$0xff] 0.0
        %367 = vst [vmem:[%s351 + $0x10] sm:$0xff] 0.0
        %368 = vst [vmem:[%s351 + $0x18] sm:$0xff] 0.0
        %369 = vst [vmem:[%s351 + $0x20] sm:$0xff] 0.0
        %370 = vst [vmem:[%s351 + $0x28] sm:$0xff] 0.0
        %371 = vst [vmem:[%s351 + $0x30] sm:$0xff] 0.0
        %372 = vst [vmem:[%s351 + $0x38] sm:$0xff] 0.0
        %373 = vst [vmem:[%s351 + $0x40] sm:$0xff] 0.0
        %374 = vst [vmem:[%s351 + $0x48] sm:$0xff] 0.0
        %375 = vst [vmem:[%s351 + $0x50] sm:$0xff] 0.0
        %376 = vst [vmem:[%s351 + $0x58] sm:$0xff] 0.0
        %377 = vst [vmem:[%s351 + $0x60] sm:$0xff] 0.0
        %378 = vst [vmem:[%s351 + $0x68] sm:$0xff] 0.0
        %379 = vst [vmem:[%s351 + $0x70] sm:$0xff] 0.0
        %380 = vst [vmem:[%s351 + $0x78] sm:$0xff] 0.0
      $region48: #{transmutation_gnn_forward.1} parent=43 // pred_fallthru
        _
      // Predicated region
      $region49: #{transmutation_gnn_forward.1} parent=43 // pred_check
        _
      $region50: #{transmutation_gnn_forward.1} parent=43 // pred_check_branch
        %382 = sbr.rel (%p358) target = $region52
      $region51: #{transmutation_gnn_forward.1} parent=43 // pred_region
        %v383 = vld [vmem:[%s338] sm:$0xf]
        %v384 = vld [vmem:[%s338 + $0x4] sm:$0xf]
        %v385 = vld [vmem:[%s338 + $0x8] sm:$0xf]
        %v386 = vld [vmem:[%s338 + $0xc] sm:$0xf]
        %v387 = vld [vmem:[%s338 + $0x10] sm:$0xf]
        %v388 = vld [vmem:[%s338 + $0x14] sm:$0xf]
        %v389 = vld [vmem:[%s338 + $0x18] sm:$0xf]
        %v390 = vld [vmem:[%s338 + $0x1c] sm:$0xf]
        %v391 = vld [vmem:[%s338 + $0x20] sm:$0xf]
        %v392 = vld [vmem:[%s338 + $0x24] sm:$0xf]
        %v393 = vld [vmem:[%s338 + $0x28] sm:$0xf]
        %v394 = vld [vmem:[%s338 + $0x2c] sm:$0xf]
        %v395 = vld [vmem:[%s338 + $0x30] sm:$0xf]
        %v396 = vld [vmem:[%s338 + $0x34] sm:$0xf]
        %v397 = vld [vmem:[%s338 + $0x38] sm:$0xf]
        %v398 = vld [vmem:[%s338 + $0x3c] sm:$0xf]
        %v399 = vld [vmem:[%s2] sm:$0xf]
        %v400 = vld [vmem:[%s2 + $0x4] sm:$0xf]
        %v401 = vld [vmem:[%s2 + $0x8] sm:$0xf]
        %v402 = vld [vmem:[%s2 + $0xc] sm:$0xf]
        %v403 = vld [vmem:[%s2 + $0x10] sm:$0xf]
        %v404 = vld [vmem:[%s2 + $0x14] sm:$0xf]
        %v405 = vld [vmem:[%s2 + $0x18] sm:$0xf]
        %v406 = vld [vmem:[%s2 + $0x1c] sm:$0xf]
        %v407 = vld [vmem:[%s2 + $0x20] sm:$0xf]
        %v408 = vld [vmem:[%s2 + $0x24] sm:$0xf]
        %v409 = vld [vmem:[%s2 + $0x28] sm:$0xf]
        %v410 = vld [vmem:[%s2 + $0x2c] sm:$0xf]
        %v411 = vld [vmem:[%s2 + $0x30] sm:$0xf]
        %v412 = vld [vmem:[%s2 + $0x34] sm:$0xf]
        %v413 = vld [vmem:[%s2 + $0x38] sm:$0xf]
        %v414 = vld [vmem:[%s2 + $0x3c] sm:$0xf]
        %v431 = vunpack.c.l.b16 %v383
        %v432 = vunpack.c.l.b16 %v384
        %v433 = vunpack.c.l.b16 %v385
        %v434 = vunpack.c.l.b16 %v386
        %v435 = vunpack.c.l.b16 %v387
        %v436 = vunpack.c.l.b16 %v388
        %v437 = vunpack.c.l.b16 %v389
        %v438 = vunpack.c.l.b16 %v390
        %v439 = vunpack.c.l.b16 %v391
        %v440 = vunpack.c.l.b16 %v392
        %v441 = vunpack.c.l.b16 %v393
        %v442 = vunpack.c.l.b16 %v394
        %v443 = vunpack.c.l.b16 %v395
        %v444 = vunpack.c.l.b16 %v396
        %v445 = vunpack.c.l.b16 %v397
        %v446 = vunpack.c.l.b16 %v398
        %v447 = vpack.c.b16 %v432, %v431
        %v448 = vpack.c.b16 %v434, %v433
        %v449 = vpack.c.b16 %v436, %v435
        %v450 = vpack.c.b16 %v438, %v437
        %v451 = vpack.c.b16 %v440, %v439
        %v452 = vpack.c.b16 %v442, %v441
        %v453 = vpack.c.b16 %v444, %v443
        %v454 = vpack.c.b16 %v446, %v445
        %v479 = vunpack.c.l.b16 %v399
        %v480 = vunpack.c.l.b16 %v400
        %v481 = vunpack.c.l.b16 %v401
        %v482 = vunpack.c.l.b16 %v402
        %v483 = vunpack.c.l.b16 %v403
        %v484 = vunpack.c.l.b16 %v404
        %v485 = vunpack.c.l.b16 %v405
        %v486 = vunpack.c.l.b16 %v406
        %v487 = vunpack.c.l.b16 %v407
        %v488 = vunpack.c.l.b16 %v408
        %v489 = vunpack.c.l.b16 %v409
        %v490 = vunpack.c.l.b16 %v410
        %v491 = vunpack.c.l.b16 %v411
        %v492 = vunpack.c.l.b16 %v412
        %v493 = vunpack.c.l.b16 %v413
        %v494 = vunpack.c.l.b16 %v414
        %v495 = vpack.c.b16 %v480, %v479
        %v496 = vpack.c.b16 %v482, %v481
        %v497 = vpack.c.b16 %v484, %v483
        %v498 = vpack.c.b16 %v486, %v485
        %v499 = vpack.c.b16 %v488, %v487
        %v500 = vpack.c.b16 %v490, %v489
        %v501 = vpack.c.b16 %v492, %v491
        %v502 = vpack.c.b16 %v494, %v493
        %511 = vmatprep.subr.bf16.mxu0 0
        %512 = vmatpush1.bf16.msra.mxu0 %v495
        %513 = vmatprep.subr.bf16.mxu0 0
        %514 = vmatpush1.bf16.msra.mxu0 %v496
        %515 = vmatprep.subr.bf16.mxu0 0
        %516 = vmatpush1.bf16.msra.mxu0 %v497
        %517 = vmatprep.subr.bf16.mxu0 0
        %518 = vmatpush1.bf16.msra.mxu0 %v498
        %519 = vmatprep.subr.bf16.mxu0 0
        %520 = vmatpush1.bf16.msra.mxu0 %v499
        %521 = vmatprep.subr.bf16.mxu0 0
        %522 = vmatpush1.bf16.msra.mxu0 %v500
        %523 = vmatprep.subr.bf16.mxu0 0
        %524 = vmatpush1.bf16.msra.mxu0 %v501
        %525 = vmatprep.subr.bf16.mxu0 0
        %526 = vmatpush1.bf16.msra.mxu0 %v502
        %527 = vmatprep.subr.bf16.mxu0 0
        %528 = vmatpush1.bf16.msra.mxu0 0
        %529 = vmatprep.subr.bf16.mxu0 0
        %530 = vmatpush1.bf16.msra.mxu0 0
        %531 = vmatprep.subr.bf16.mxu0 0
        %532 = vmatpush1.bf16.msra.mxu0 0
        %533 = vmatprep.subr.bf16.mxu0 0
        %534 = vmatpush1.bf16.msra.mxu0 0
        %535 = vmatprep.subr.bf16.mxu0 0
        %536 = vmatpush1.bf16.msra.mxu0 0
        %537 = vmatprep.subr.bf16.mxu0 0
        %538 = vmatpush1.bf16.msra.mxu0 0
        %539 = vmatprep.subr.bf16.mxu0 0
        %540 = vmatpush1.bf16.msra.mxu0 0
        %541 = vmatprep.subr.bf16.mxu0 0
        %542 = vmatpush1.bf16.msra.mxu0 0
        %543 = vmatprep.mubr.bf16.mxu0 0
        %544 = vmatmul.mubr.bf16.gmra.mrb[0].mxu0 %v447
        %v545 = vpop.f32.mrb[0].mxu0
        %v546 = vadd.f32 0.0, %v545
        %v547 = vpop.f32.mrb[0].mxu0
        %v548 = vpop.f32.mrb[0].mxu0
        %v549 = vadd.f32 0.0, %v548
        %v550 = vpop.f32.mrb[0].mxu0
        %551 = vmatprep.mubr.bf16.mxu0 0
        %552 = vmatmul.mubr.bf16.gmra.mrb[0].mxu0 %v448
        %v553 = vpop.f32.mrb[0].mxu0
        %v554 = vadd.f32 0.0, %v553
        %v555 = vpop.f32.mrb[0].mxu0
        %v556 = vpop.f32.mrb[0].mxu0
        %v557 = vadd.f32 0.0, %v556
        %v558 = vpop.f32.mrb[0].mxu0
        %559 = vmatprep.mubr.bf16.mxu0 0
        %560 = vmatmul.mubr.bf16.gmra.mrb[0].mxu0 %v449
        %v561 = vpop.f32.mrb[0].mxu0
        %v562 = vadd.f32 0.0, %v561
        %v563 = vpop.f32.mrb[0].mxu0
        %v564 = vpop.f32.mrb[0].mxu0
        %v565 = vadd.f32 0.0, %v564
        %v566 = vpop.f32.mrb[0].mxu0
        %567 = vmatprep.mubr.bf16.mxu0 0
        %568 = vmatmul.mubr.bf16.gmra.mrb[0].mxu0 %v450
        %v569 = vpop.f32.mrb[0].mxu0
        %v570 = vadd.f32 0.0, %v569
        %v571 = vpop.f32.mrb[0].mxu0
        %v572 = vpop.f32.mrb[0].mxu0
        %v573 = vadd.f32 0.0, %v572
        %v574 = vpop.f32.mrb[0].mxu0
        %575 = vmatprep.mubr.bf16.mxu0 0
        %576 = vmatmul.mubr.bf16.gmra.mrb[0].mxu0 %v451
        %v577 = vpop.f32.mrb[0].mxu0
        %v578 = vadd.f32 0.0, %v577
        %v579 = vpop.f32.mrb[0].mxu0
        %v580 = vpop.f32.mrb[0].mxu0
        %v581 = vadd.f32 0.0, %v580
        %v582 = vpop.f32.mrb[0].mxu0
        %583 = vmatprep.mubr.bf16.mxu0 0
        %584 = vmatmul.mubr.bf16.gmra.mrb[0].mxu0 %v452
        %v585 = vpop.f32.mrb[0].mxu0
        %v586 = vadd.f32 0.0, %v585
        %v587 = vpop.f32.mrb[0].mxu0
        %v588 = vpop.f32.mrb[0].mxu0
        %v589 = vadd.f32 0.0, %v588
        %v590 = vpop.f32.mrb[0].mxu0
        %591 = vmatprep.mubr.bf16.mxu0 0
        %592 = vmatmul.mubr.bf16.gmra.mrb[0].mxu0 %v453
        %v593 = vpop.f32.mrb[0].mxu0
        %v594 = vadd.f32 0.0, %v593
        %v595 = vpop.f32.mrb[0].mxu0
        %v596 = vpop.f32.mrb[0].mxu0
        %v597 = vadd.f32 0.0, %v596
        %v598 = vpop.f32.mrb[0].mxu0
        %599 = vmatprep.mubr.bf16.mxu0 0
        %600 = vmatmul.mubr.bf16.gmra.mrb[0].mxu0 %v454
        %v601 = vpop.f32.mrb[0].mxu0
        %v602 = vadd.f32 0.0, %v601
        %v603 = vpop.f32.mrb[0].mxu0
        %v604 = vpop.f32.mrb[0].mxu0
        %v605 = vadd.f32 0.0, %v604
        %v606 = vpop.f32.mrb[0].mxu0
        %607 = vdwg.mxu0
        %v608 = vpack.c.bf16 %v549, %v546
        %v609 = vpack.c.bf16 %v557, %v554
        %v610 = vpack.c.bf16 %v565, %v562
        %v611 = vpack.c.bf16 %v573, %v570
        %v612 = vpack.c.bf16 %v581, %v578
        %v613 = vpack.c.bf16 %v589, %v586
        %v614 = vpack.c.bf16 %v597, %v594
        %v615 = vpack.c.bf16 %v605, %v602
        %s616 = sshra.s32 %s355, 4
        %s617 = sand.u32 %s355, 15
        %s618 = smul.addr %s616, 8
        %s619 = scalar_lea.vmem [#allocation2], %s618
        %620 = vst [vmem:[%s619] sm:$0xff] %v608
        %621 = vst [vmem:[%s619 + $0x8] sm:$0xff] %v609
        %622 = vst [vmem:[%s619 + $0x10] sm:$0xff] %v610
        %623 = vst [vmem:[%s619 + $0x18] sm:$0xff] %v611
        %624 = vst [vmem:[%s619 + $0x20] sm:$0xff] %v612
        %625 = vst [vmem:[%s619 + $0x28] sm:$0xff] %v613
        %626 = vst [vmem:[%s619 + $0x30] sm:$0xff] %v614
        %627 = vst [vmem:[%s619 + $0x38] sm:$0xff] %v615
      $region52: #{transmutation_gnn_forward.1} parent=43 // pred_fallthru
        _
      %p628 = scmp.eq.s32.totalorder %s22, 1
      %p629 = pnand %p628, %p357
      %p630 = pneg %p629
      // Predicated region
      $region53: #{transmutation_gnn_forward.1} parent=43 // pred_check
        _
      $region54: #{transmutation_gnn_forward.1} parent=43 // pred_check_branch
        %632 = sbr.rel (%p629) target = $region56
      $region55: #{transmutation_gnn_forward.1} parent=43 // pred_region
        %s633 = sshra.s32 %s355, 4
        %s634 = sand.u32 %s355, 15
        %s635 = smul.addr %s633, 8
        %s636 = scalar_lea.vmem [#allocation3], %s635
        %v637 = vld [vmem:[%s636] sm:$0xff]
        %v638 = vld [vmem:[%s636 + $0x8] sm:$0xff]
        %v639 = vld [vmem:[%s636 + $0x10] sm:$0xff]
        %v640 = vld [vmem:[%s636 + $0x18] sm:$0xff]
        %v641 = vld [vmem:[%s636 + $0x20] sm:$0xff]
        %v642 = vld [vmem:[%s636 + $0x28] sm:$0xff]
        %v643 = vld [vmem:[%s636 + $0x30] sm:$0xff]
        %v644 = vld [vmem:[%s636 + $0x38] sm:$0xff]
        %v645 = vld [vmem:[%s3] sm:$0xf]
        %v646 = vld [vmem:[%s3 + $0x4] sm:$0xf]
        %v647 = vld [vmem:[%s3 + $0x8] sm:$0xf]
        %v648 = vld [vmem:[%s3 + $0xc] sm:$0xf]
        %v649 = vld [vmem:[%s3 + $0x10] sm:$0xf]
        %v650 = vld [vmem:[%s3 + $0x14] sm:$0xf]
        %v651 = vld [vmem:[%s3 + $0x18] sm:$0xf]
        %v652 = vld [vmem:[%s3 + $0x1c] sm:$0xf]
        %v653 = vld [vmem:[%s3 + $0x20] sm:$0xf]
        %v654 = vld [vmem:[%s3 + $0x24] sm:$0xf]
        %v655 = vld [vmem:[%s3 + $0x28] sm:$0xf]
        %v656 = vld [vmem:[%s3 + $0x2c] sm:$0xf]
        %v657 = vld [vmem:[%s3 + $0x30] sm:$0xf]
        %v658 = vld [vmem:[%s3 + $0x34] sm:$0xf]
        %v659 = vld [vmem:[%s3 + $0x38] sm:$0xf]
        %v660 = vld [vmem:[%s3 + $0x3c] sm:$0xf]
        %v677 = vunpack.c.l.b16 %v645
        %v678 = vunpack.c.l.b16 %v646
        %v679 = vunpack.c.l.b16 %v647
        %v680 = vunpack.c.l.b16 %v648
        %v681 = vunpack.c.l.b16 %v649
        %v682 = vunpack.c.l.b16 %v650
        %v683 = vunpack.c.l.b16 %v651
        %v684 = vunpack.c.l.b16 %v652
        %v685 = vunpack.c.l.b16 %v653
        %v686 = vunpack.c.l.b16 %v654
        %v687 = vunpack.c.l.b16 %v655
        %v688 = vunpack.c.l.b16 %v656
        %v689 = vunpack.c.l.b16 %v657
        %v690 = vunpack.c.l.b16 %v658
        %v691 = vunpack.c.l.b16 %v659
        %v692 = vunpack.c.l.b16 %v660
        %v693 = vpack.c.b16 %v678, %v677
        %v694 = vpack.c.b16 %v680, %v679
        %v695 = vpack.c.b16 %v682, %v681
        %v696 = vpack.c.b16 %v684, %v683
        %v697 = vpack.c.b16 %v686, %v685
        %v698 = vpack.c.b16 %v688, %v687
        %v699 = vpack.c.b16 %v690, %v689
        %v700 = vpack.c.b16 %v692, %v691
        %709 = vmatprep.subr.bf16.mxu0 0
        %710 = vmatpush1.bf16.msra.mxu0 %v693
        %711 = vmatprep.subr.bf16.mxu0 0
        %712 = vmatpush1.bf16.msra.mxu0 %v694
        %713 = vmatprep.subr.bf16.mxu0 0
        %714 = vmatpush1.bf16.msra.mxu0 %v695
        %715 = vmatprep.subr.bf16.mxu0 0
        %716 = vmatpush1.bf16.msra.mxu0 %v696
        %717 = vmatprep.subr.bf16.mxu0 0
        %718 = vmatpush1.bf16.msra.mxu0 %v697
        %719 = vmatprep.subr.bf16.mxu0 0
        %720 = vmatpush1.bf16.msra.mxu0 %v698
        %721 = vmatprep.subr.bf16.mxu0 0
        %722 = vmatpush1.bf16.msra.mxu0 %v699
        %723 = vmatprep.subr.bf16.mxu0 0
        %724 = vmatpush1.bf16.msra.mxu0 %v700
        %725 = vmatprep.subr.bf16.mxu0 0
        %726 = vmatpush1.bf16.msra.mxu0 0
        %727 = vmatprep.subr.bf16.mxu0 0
        %728 = vmatpush1.bf16.msra.mxu0 0
        %729 = vmatprep.subr.bf16.mxu0 0
        %730 = vmatpush1.bf16.msra.mxu0 0
        %731 = vmatprep.subr.bf16.mxu0 0
        %732 = vmatpush1.bf16.msra.mxu0 0
        %733 = vmatprep.subr.bf16.mxu0 0
        %734 = vmatpush1.bf16.msra.mxu0 0
        %735 = vmatprep.subr.bf16.mxu0 0
        %736 = vmatpush1.bf16.msra.mxu0 0
        %737 = vmatprep.subr.bf16.mxu0 0
        %738 = vmatpush1.bf16.msra.mxu0 0
        %739 = vmatprep.subr.bf16.mxu0 0
        %740 = vmatpush1.bf16.msra.mxu0 0
        %741 = vmatprep.mubr.bf16.mxu0 0
        %742 = vmatmul.mubr.bf16.gmra.mrb[0].mxu0 %v637
        %v743 = vpop.f32.mrb[0].mxu0
        %v744 = vadd.f32 0.0, %v743
        %v745 = vpop.f32.mrb[0].mxu0
        %v746 = vpop.f32.mrb[0].mxu0
        %v747 = vadd.f32 0.0, %v746
        %v748 = vpop.f32.mrb[0].mxu0
        %749 = vmatprep.mubr.bf16.mxu0 0
        %750 = vmatmul.mubr.bf16.gmra.mrb[0].mxu0 %v638
        %v751 = vpop.f32.mrb[0].mxu0
        %v752 = vadd.f32 0.0, %v751
        %v753 = vpop.f32.mrb[0].mxu0
        %v754 = vpop.f32.mrb[0].mxu0
        %v755 = vadd.f32 0.0, %v754
        %v756 = vpop.f32.mrb[0].mxu0
        %757 = vmatprep.mubr.bf16.mxu0 0
        %758 = vmatmul.mubr.bf16.gmra.mrb[0].mxu0 %v639
        %v759 = vpop.f32.mrb[0].mxu0
        %v760 = vadd.f32 0.0, %v759
        %v761 = vpop.f32.mrb[0].mxu0
        %v762 = vpop.f32.mrb[0].mxu0
        %v763 = vadd.f32 0.0, %v762
        %v764 = vpop.f32.mrb[0].mxu0
        %765 = vmatprep.mubr.bf16.mxu0 0
        %766 = vmatmul.mubr.bf16.gmra.mrb[0].mxu0 %v640
        %v767 = vpop.f32.mrb[0].mxu0
        %v768 = vadd.f32 0.0, %v767
        %v769 = vpop.f32.mrb[0].mxu0
        %v770 = vpop.f32.mrb[0].mxu0
        %v771 = vadd.f32 0.0, %v770
        %v772 = vpop.f32.mrb[0].mxu0
        %773 = vmatprep.mubr.bf16.mxu0 0
        %774 = vmatmul.mubr.bf16.gmra.mrb[0].mxu0 %v641
        %v775 = vpop.f32.mrb[0].mxu0
        %v776 = vadd.f32 0.0, %v775
        %v777 = vpop.f32.mrb[0].mxu0
        %v778 = vpop.f32.mrb[0].mxu0
        %v779 = vadd.f32 0.0, %v778
        %v780 = vpop.f32.mrb[0].mxu0
        %781 = vmatprep.mubr.bf16.mxu0 0
        %782 = vmatmul.mubr.bf16.gmra.mrb[0].mxu0 %v642
        %v783 = vpop.f32.mrb[0].mxu0
        %v784 = vadd.f32 0.0, %v783
        %v785 = vpop.f32.mrb[0].mxu0
        %v786 = vpop.f32.mrb[0].mxu0
        %v787 = vadd.f32 0.0, %v786
        %v788 = vpop.f32.mrb[0].mxu0
        %789 = vmatprep.mubr.bf16.mxu0 0
        %790 = vmatmul.mubr.bf16.gmra.mrb[0].mxu0 %v643
        %v791 = vpop.f32.mrb[0].mxu0
        %v792 = vadd.f32 0.0, %v791
        %v793 = vpop.f32.mrb[0].mxu0
        %v794 = vpop.f32.mrb[0].mxu0
        %v795 = vadd.f32 0.0, %v794
        %v796 = vpop.f32.mrb[0].mxu0
        %797 = vmatprep.mubr.bf16.mxu0 0
        %798 = vmatmul.mubr.bf16.gmra.mrb[0].mxu0 %v644
        %v799 = vpop.f32.mrb[0].mxu0
        %v800 = vadd.f32 0.0, %v799
        %v801 = vpop.f32.mrb[0].mxu0
        %v802 = vpop.f32.mrb[0].mxu0
        %v803 = vadd.f32 0.0, %v802
        %v804 = vpop.f32.mrb[0].mxu0
        %805 = vdwg.mxu0
        %v806 = vpack.c.bf16 %v747, %v744
        %v807 = vpack.c.bf16 %v755, %v752
        %v808 = vpack.c.bf16 %v763, %v760
        %v809 = vpack.c.bf16 %v771, %v768
        %v810 = vpack.c.bf16 %v779, %v776
        %v811 = vpack.c.bf16 %v787, %v784
        %v812 = vpack.c.bf16 %v795, %v792
        %v813 = vpack.c.bf16 %v803, %v800
        %s814 = smul.addr %s633, 8
        %s815 = scalar_lea.vmem [#allocation2], %s814
        %816 = vst [vmem:[%s815] sm:$0xff] %v806
        %817 = vst [vmem:[%s815 + $0x8] sm:$0xff] %v807
        %818 = vst [vmem:[%s815 + $0x10] sm:$0xff] %v808
        %819 = vst [vmem:[%s815 + $0x18] sm:$0xff] %v809
        %820 = vst [vmem:[%s815 + $0x20] sm:$0xff] %v810
        %821 = vst [vmem:[%s815 + $0x28] sm:$0xff] %v811
        %822 = vst [vmem:[%s815 + $0x30] sm:$0xff] %v812
        %823 = vst [vmem:[%s815 + $0x38] sm:$0xff] %v813
      $region56: #{transmutation_gnn_forward.1} parent=43 // pred_fallthru
        _
      // Predicated region
      $region57: #{transmutation_gnn_forward.1} parent=43 // pred_check
        %p824 = pneg %p360
      $region58: #{transmutation_gnn_forward.1} parent=43 // pred_check_branch
        %826 = sbr.rel (%p824) target = $region60
      $region59: #{transmutation_gnn_forward.1} parent=43 // pred_region
        %827 = vst [vmem:[#allocation4] sm:$0xff] 0.0
        %828 = vst [vmem:[#allocation4 + $0x8] sm:$0xff] 0.0
        %829 = vst [vmem:[#allocation4 + $0x10] sm:$0xff] 0.0
        %830 = vst [vmem:[#allocation4 + $0x18] sm:$0xff] 0.0
        %831 = vst [vmem:[#allocation4 + $0x20] sm:$0xff] 0.0
        %832 = vst [vmem:[#allocation4 + $0x28] sm:$0xff] 0.0
        %833 = vst [vmem:[#allocation4 + $0x30] sm:$0xff] 0.0
        %834 = vst [vmem:[#allocation4 + $0x38] sm:$0xff] 0.0
        %835 = vst [vmem:[#allocation4 + $0x40] sm:$0xff] 0.0
        %836 = vst [vmem:[#allocation4 + $0x48] sm:$0xff] 0.0
        %837 = vst [vmem:[#allocation4 + $0x50] sm:$0xff] 0.0
        %838 = vst [vmem:[#allocation4 + $0x58] sm:$0xff] 0.0
        %839 = vst [vmem:[#allocation4 + $0x60] sm:$0xff] 0.0
        %840 = vst [vmem:[#allocation4 + $0x68] sm:$0xff] 0.0
        %841 = vst [vmem:[#allocation4 + $0x70] sm:$0xff] 0.0
        %842 = vst [vmem:[#allocation4 + $0x78] sm:$0xff] 0.0
      $region60: #{transmutation_gnn_forward.1} parent=43 // pred_fallthru
        _
      %v843 = vld [vmem:[#allocation4] sm:$0xff]
      %v844 = vld [vmem:[#allocation4 + $0x8] sm:$0xff]
      %v845 = vld [vmem:[#allocation4 + $0x10] sm:$0xff]
      %v846 = vld [vmem:[#allocation4 + $0x18] sm:$0xff]
      %v847 = vld [vmem:[#allocation4 + $0x20] sm:$0xff]
      %v848 = vld [vmem:[#allocation4 + $0x28] sm:$0xff]
      %v849 = vld [vmem:[#allocation4 + $0x30] sm:$0xff]
      %v850 = vld [vmem:[#allocation4 + $0x38] sm:$0xff]
      %v851 = vld [vmem:[#allocation4 + $0x40] sm:$0xff]
      %v852 = vld [vmem:[#allocation4 + $0x48] sm:$0xff]
      %v853 = vld [vmem:[#allocation4 + $0x50] sm:$0xff]
      %v854 = vld [vmem:[#allocation4 + $0x58] sm:$0xff]
      %v855 = vld [vmem:[#allocation4 + $0x60] sm:$0xff]
      %v856 = vld [vmem:[#allocation4 + $0x68] sm:$0xff]
      %v857 = vld [vmem:[#allocation4 + $0x70] sm:$0xff]
      %v858 = vld [vmem:[#allocation4 + $0x78] sm:$0xff]
      %v859 = vld [vmem:[%s326] sm:$0xf]
      %v860 = vld [vmem:[%s326 + $0x4] sm:$0xf]
      %v861 = vld [vmem:[%s326 + $0x8] sm:$0xf]
      %v862 = vld [vmem:[%s326 + $0xc] sm:$0xf]
      %v863 = vld [vmem:[%s326 + $0x10] sm:$0xf]
      %v864 = vld [vmem:[%s326 + $0x14] sm:$0xf]
      %v865 = vld [vmem:[%s326 + $0x18] sm:$0xf]
      %v866 = vld [vmem:[%s326 + $0x1c] sm:$0xf]
      %v867 = vld [vmem:[%s326 + $0x20] sm:$0xf]
      %v868 = vld [vmem:[%s326 + $0x24] sm:$0xf]
      %v869 = vld [vmem:[%s326 + $0x28] sm:$0xf]
      %v870 = vld [vmem:[%s326 + $0x2c] sm:$0xf]
      %v871 = vld [vmem:[%s326 + $0x30] sm:$0xf]
      %v872 = vld [vmem:[%s326 + $0x34] sm:$0xf]
      %v873 = vld [vmem:[%s326 + $0x38] sm:$0xf]
      %v874 = vld [vmem:[%s326 + $0x3c] sm:$0xf]
      %s875 = sshra.s32 %s355, 4
      %s876 = sand.u32 %s355, 15
      %s877 = smul.addr %s875, 8
      %s878 = scalar_lea.vmem [#allocation2], %s877
      %v879 = vld [vmem:[%s878] sm:$0xff]
      %v880 = vld [vmem:[%s878 + $0x8] sm:$0xff]
      %v881 = vld [vmem:[%s878 + $0x10] sm:$0xff]
      %v882 = vld [vmem:[%s878 + $0x18] sm:$0xff]
      %v883 = vld [vmem:[%s878 + $0x20] sm:$0xff]
      %v884 = vld [vmem:[%s878 + $0x28] sm:$0xff]
      %v885 = vld [vmem:[%s878 + $0x30] sm:$0xff]
      %v886 = vld [vmem:[%s878 + $0x38] sm:$0xff]
      %v903 = vunpack.c.l.b16 %v859
      %v904 = vunpack.c.l.b16 %v860
      %v905 = vunpack.c.l.b16 %v861
      %v906 = vunpack.c.l.b16 %v862
      %v907 = vunpack.c.l.b16 %v863
      %v908 = vunpack.c.l.b16 %v864
      %v909 = vunpack.c.l.b16 %v865
      %v910 = vunpack.c.l.b16 %v866
      %v911 = vunpack.c.l.b16 %v867
      %v912 = vunpack.c.l.b16 %v868
      %v913 = vunpack.c.l.b16 %v869
      %v914 = vunpack.c.l.b16 %v870
      %v915 = vunpack.c.l.b16 %v871
      %v916 = vunpack.c.l.b16 %v872
      %v917 = vunpack.c.l.b16 %v873
      %v918 = vunpack.c.l.b16 %v874
      %v919 = vpack.c.b16 %v904, %v903
      %v920 = vpack.c.b16 %v906, %v905
      %v921 = vpack.c.b16 %v908, %v907
      %v922 = vpack.c.b16 %v910, %v909
      %v923 = vpack.c.b16 %v912, %v911
      %v924 = vpack.c.b16 %v914, %v913
      %v925 = vpack.c.b16 %v916, %v915
      %v926 = vpack.c.b16 %v918, %v917
      %935 = vmatprep.subr.bf16.mxu0 0
      %936 = vmatpush1.bf16.msra.mxu0 %v879
      %937 = vmatprep.subr.bf16.mxu0 0
      %938 = vmatpush1.bf16.msra.mxu0 %v880
      %939 = vmatprep.subr.bf16.mxu0 0
      %940 = vmatpush1.bf16.msra.mxu0 %v881
      %941 = vmatprep.subr.bf16.mxu0 0
      %942 = vmatpush1.bf16.msra.mxu0 %v882
      %943 = vmatprep.subr.bf16.mxu0 0
      %944 = vmatpush1.bf16.msra.mxu0 %v883
      %945 = vmatprep.subr.bf16.mxu0 0
      %946 = vmatpush1.bf16.msra.mxu0 %v884
      %947 = vmatprep.subr.bf16.mxu0 0
      %948 = vmatpush1.bf16.msra.mxu0 %v885
      %949 = vmatprep.subr.bf16.mxu0 0
      %950 = vmatpush1.bf16.msra.mxu0 %v886
      %951 = vmatprep.subr.bf16.mxu0 0
      %952 = vmatpush1.bf16.msra.mxu0 0
      %953 = vmatprep.subr.bf16.mxu0 0
      %954 = vmatpush1.bf16.msra.mxu0 0
      %955 = vmatprep.subr.bf16.mxu0 0
      %956 = vmatpush1.bf16.msra.mxu0 0
      %957 = vmatprep.subr.bf16.mxu0 0
      %958 = vmatpush1.bf16.msra.mxu0 0
      %959 = vmatprep.subr.bf16.mxu0 0
      %960 = vmatpush1.bf16.msra.mxu0 0
      %961 = vmatprep.subr.bf16.mxu0 0
      %962 = vmatpush1.bf16.msra.mxu0 0
      %963 = vmatprep.subr.bf16.mxu0 0
      %964 = vmatpush1.bf16.msra.mxu0 0
      %965 = vmatprep.subr.bf16.mxu0 0
      %966 = vmatpush1.bf16.msra.mxu0 0
      %967 = vmatprep.mubr.bf16.mxu0 0
      %968 = vmatmul.mubr.bf16.gmra.mrb[0].mxu0 %v919
      %v969 = vpop.f32.mrb[0].mxu0
      %v970 = vadd.f32 0.0, %v969
      %v971 = vpop.f32.mrb[0].mxu0
      %v972 = vpop.f32.mrb[0].mxu0
      %v973 = vadd.f32 0.0, %v972
      %v974 = vpop.f32.mrb[0].mxu0
      %975 = vmatprep.mubr.bf16.mxu0 0
      %976 = vmatmul.mubr.bf16.gmra.mrb[0].mxu0 %v920
      %v977 = vpop.f32.mrb[0].mxu0
      %v978 = vadd.f32 0.0, %v977
      %v979 = vpop.f32.mrb[0].mxu0
      %v980 = vpop.f32.mrb[0].mxu0
      %v981 = vadd.f32 0.0, %v980
      %v982 = vpop.f32.mrb[0].mxu0
      %983 = vmatprep.mubr.bf16.mxu0 0
      %984 = vmatmul.mubr.bf16.gmra.mrb[0].mxu0 %v921
      %v985 = vpop.f32.mrb[0].mxu0
      %v986 = vadd.f32 0.0, %v985
      %v987 = vpop.f32.mrb[0].mxu0
      %v988 = vpop.f32.mrb[0].mxu0
      %v989 = vadd.f32 0.0, %v988
      %v990 = vpop.f32.mrb[0].mxu0
      %991 = vmatprep.mubr.bf16.mxu0 0
      %992 = vmatmul.mubr.bf16.gmra.mrb[0].mxu0 %v922
      %v993 = vpop.f32.mrb[0].mxu0
      %v994 = vadd.f32 0.0, %v993
      %v995 = vpop.f32.mrb[0].mxu0
      %v996 = vpop.f32.mrb[0].mxu0
      %v997 = vadd.f32 0.0, %v996
      %v998 = vpop.f32.mrb[0].mxu0
      %999 = vmatprep.mubr.bf16.mxu0 0
      %1000 = vmatmul.mubr.bf16.gmra.mrb[0].mxu0 %v923
      %v1001 = vpop.f32.mrb[0].mxu0
      %v1002 = vadd.f32 0.0, %v1001
      %v1003 = vpop.f32.mrb[0].mxu0
      %v1004 = vpop.f32.mrb[0].mxu0
      %v1005 = vadd.f32 0.0, %v1004
      %v1006 = vpop.f32.mrb[0].mxu0
      %1007 = vmatprep.mubr.bf16.mxu0 0
      %1008 = vmatmul.mubr.bf16.gmra.mrb[0].mxu0 %v924
      %v1009 = vpop.f32.mrb[0].mxu0
      %v1010 = vadd.f32 0.0, %v1009
      %v1011 = vpop.f32.mrb[0].mxu0
      %v1012 = vpop.f32.mrb[0].mxu0
      %v1013 = vadd.f32 0.0, %v1012
      %v1014 = vpop.f32.mrb[0].mxu0
      %1015 = vmatprep.mubr.bf16.mxu0 0
      %1016 = vmatmul.mubr.bf16.gmra.mrb[0].mxu0 %v925
      %v1017 = vpop.f32.mrb[0].mxu0
      %v1018 = vadd.f32 0.0, %v1017
      %v1019 = vpop.f32.mrb[0].mxu0
      %v1020 = vpop.f32.mrb[0].mxu0
      %v1021 = vadd.f32 0.0, %v1020
      %v1022 = vpop.f32.mrb[0].mxu0
      %1023 = vmatprep.mubr.bf16.mxu0 0
      %1024 = vmatmul.mubr.bf16.gmra.mrb[0].mxu0 %v926
      %v1025 = vpop.f32.mrb[0].mxu0
      %v1026 = vadd.f32 0.0, %v1025
      %v1027 = vpop.f32.mrb[0].mxu0
      %v1028 = vpop.f32.mrb[0].mxu0
      %v1029 = vadd.f32 0.0, %v1028
      %v1030 = vpop.f32.mrb[0].mxu0
      %1031 = vdwg.mxu0
      %v1032 = vadd.f32 %v843, %v970
      %v1033 = vadd.f32 %v844, %v973
      %v1034 = vadd.f32 %v845, %v978
      %v1035 = vadd.f32 %v846, %v981
      %v1036 = vadd.f32 %v847, %v986
      %v1037 = vadd.f32 %v848, %v989
      %v1038 = vadd.f32 %v849, %v994
      %v1039 = vadd.f32 %v850, %v997
      %v1040 = vadd.f32 %v851, %v1002
      %v1041 = vadd.f32 %v852, %v1005
      %v1042 = vadd.f32 %v853, %v1010
      %v1043 = vadd.f32 %v854, %v1013
      %v1044 = vadd.f32 %v855, %v1018
      %v1045 = vadd.f32 %v856, %v1021
      %v1046 = vadd.f32 %v857, %v1026
      %v1047 = vadd.f32 %v858, %v1029
      %1048 = vst [vmem:[#allocation4] sm:$0xff] %v1032
      %1049 = vst [vmem:[#allocation4 + $0x8] sm:$0xff] %v1033
      %1050 = vst [vmem:[#allocation4 + $0x10] sm:$0xff] %v1034
      %1051 = vst [vmem:[#allocation4 + $0x18] sm:$0xff] %v1035
      %1052 = vst [vmem:[#allocation4 + $0x20] sm:$0xff] %v1036
      %1053 = vst [vmem:[#allocation4 + $0x28] sm:$0xff] %v1037
      %1054 = vst [vmem:[#allocation4 + $0x30] sm:$0xff] %v1038
      %1055 = vst [vmem:[#allocation4 + $0x38] sm:$0xff] %v1039
      %1056 = vst [vmem:[#allocation4 + $0x40] sm:$0xff] %v1040
      %1057 = vst [vmem:[#allocation4 + $0x48] sm:$0xff] %v1041
      %1058 = vst [vmem:[#allocation4 + $0x50] sm:$0xff] %v1042
      %1059 = vst [vmem:[#allocation4 + $0x58] sm:$0xff] %v1043
      %1060 = vst [vmem:[#allocation4 + $0x60] sm:$0xff] %v1044
      %1061 = vst [vmem:[#allocation4 + $0x68] sm:$0xff] %v1045
      %1062 = vst [vmem:[#allocation4 + $0x70] sm:$0xff] %v1046
      %1063 = vst [vmem:[#allocation4 + $0x78] sm:$0xff] %v1047
      %p1064 = pnand %p360, %p356
      %p1065 = pneg %p1064
      // Predicated region
      $region61: #{transmutation_gnn_forward.1} parent=43 // pred_check
        _
      $region62: #{transmutation_gnn_forward.1} parent=43 // pred_check_branch
        %1067 = sbr.rel (%p1064) target = $region64
      $region63: #{transmutation_gnn_forward.1} parent=43 // pred_region
        %s1068 = smul.u32 %s23, 128
        %v1069 = vld [vmem:[#allocation4] sm:$0xff]
        %v1070 = vld [vmem:[#allocation4 + $0x8] sm:$0xff]
        %v1071 = vld [vmem:[#allocation4 + $0x10] sm:$0xff]
        %v1072 = vld [vmem:[#allocation4 + $0x18] sm:$0xff]
        %v1073 = vld [vmem:[#allocation4 + $0x20] sm:$0xff]
        %v1074 = vld [vmem:[#allocation4 + $0x28] sm:$0xff]
        %v1075 = vld [vmem:[#allocation4 + $0x30] sm:$0xff]
        %v1076 = vld [vmem:[#allocation4 + $0x38] sm:$0xff]
        %v1077 = vld [vmem:[#allocation4 + $0x40] sm:$0xff]
        %v1078 = vld [vmem:[#allocation4 + $0x48] sm:$0xff]
        %v1079 = vld [vmem:[#allocation4 + $0x50] sm:$0xff]
        %v1080 = vld [vmem:[#allocation4 + $0x58] sm:$0xff]
        %v1081 = vld [vmem:[#allocation4 + $0x60] sm:$0xff]
        %v1082 = vld [vmem:[#allocation4 + $0x68] sm:$0xff]
        %v1083 = vld [vmem:[#allocation4 + $0x70] sm:$0xff]
        %v1084 = vld [vmem:[#allocation4 + $0x78] sm:$0xff]
        %v1085 = vld [vmem:[%s4] sm:$0x1]
        %v1087 = vlaneseq
        %v1088 = vshrl.u32 %v1087, 7
        %v1089 = vsub.s32 0, %v1088
        %v1090 = vrot.slane %v1085, %v1089
        %v1092 = vadd.f32 %v1069, %v1090
        %v1093 = vadd.f32 %v1070, %v1090
        %v1094 = vadd.f32 %v1071, %v1090
        %v1095 = vadd.f32 %v1072, %v1090
        %v1096 = vadd.f32 %v1073, %v1090
        %v1097 = vadd.f32 %v1074, %v1090
        %v1098 = vadd.f32 %v1075, %v1090
        %v1099 = vadd.f32 %v1076, %v1090
        %v1100 = vadd.f32 %v1077, %v1090
        %v1101 = vadd.f32 %v1078, %v1090
        %v1102 = vadd.f32 %v1079, %v1090
        %v1103 = vadd.f32 %v1080, %v1090
        %v1104 = vadd.f32 %v1081, %v1090
        %v1105 = vadd.f32 %v1082, %v1090
        %v1106 = vadd.f32 %v1083, %v1090
        %v1107 = vadd.f32 %v1084, %v1090
        %v1108 = vmax.f32 %v1092, 0.0
        %v1109 = vmax.f32 %v1093, 0.0
        %v1110 = vmax.f32 %v1094, 0.0
        %v1111 = vmax.f32 %v1095, 0.0
        %v1112 = vmax.f32 %v1096, 0.0
        %v1113 = vmax.f32 %v1097, 0.0
        %v1114 = vmax.f32 %v1098, 0.0
        %v1115 = vmax.f32 %v1099, 0.0
        %v1116 = vmax.f32 %v1100, 0.0
        %v1117 = vmax.f32 %v1101, 0.0
        %v1118 = vmax.f32 %v1102, 0.0
        %v1119 = vmax.f32 %v1103, 0.0
        %v1120 = vmax.f32 %v1104, 0.0
        %v1121 = vmax.f32 %v1105, 0.0
        %v1122 = vmax.f32 %v1106, 0.0
        %v1123 = vmax.f32 %v1107, 0.0
        %v1124 = vpack.c.bf16 %v1109, %v1108
        %v1125 = vpack.c.bf16 %v1111, %v1110
        %v1126 = vpack.c.bf16 %v1113, %v1112
        %v1127 = vpack.c.bf16 %v1115, %v1114
        %v1128 = vpack.c.bf16 %v1117, %v1116
        %v1129 = vpack.c.bf16 %v1119, %v1118
        %v1130 = vpack.c.bf16 %v1121, %v1120
        %v1131 = vpack.c.bf16 %v1123, %v1122
        %s1132 = sshra.s32 %s1068, 4
        %s1133 = sand.u32 %s1068, 15
        %s1134 = smul.addr %s1132, 8
        %s1135 = scalar_lea.vmem [#allocation3], %s1134
        %1136 = vst [vmem:[%s1135] sm:$0xff] %v1124
        %1137 = vst [vmem:[%s1135 + $0x8] sm:$0xff] %v1125
        %1138 = vst [vmem:[%s1135 + $0x10] sm:$0xff] %v1126
        %1139 = vst [vmem:[%s1135 + $0x18] sm:$0xff] %v1127
        %1140 = vst [vmem:[%s1135 + $0x20] sm:$0xff] %v1128
        %1141 = vst [vmem:[%s1135 + $0x28] sm:$0xff] %v1129
        %1142 = vst [vmem:[%s1135 + $0x30] sm:$0xff] %v1130
        %1143 = vst [vmem:[%s1135 + $0x38] sm:$0xff] %v1131
      $region64: #{transmutation_gnn_forward.1} parent=43 // pred_fallthru
        _
      %p1144 = pnand %p360, %p628
      %p1145 = pneg %p1144
      // Predicated region
      $region65: #{transmutation_gnn_forward.1} parent=43 // pred_check
        _
      $region66: #{transmutation_gnn_forward.1} parent=43 // pred_check_branch
        %1147 = sbr.rel (%p1144) target = $region68
      $region67: #{transmutation_gnn_forward.1} parent=43 // pred_region
        %v1148 = vld [vmem:[#allocation4] sm:$0xff]
        %v1149 = vld [vmem:[#allocation4 + $0x8] sm:$0xff]
        %v1150 = vld [vmem:[#allocation4 + $0x10] sm:$0xff]
        %v1151 = vld [vmem:[#allocation4 + $0x18] sm:$0xff]
        %v1152 = vld [vmem:[#allocation4 + $0x20] sm:$0xff]
        %v1153 = vld [vmem:[#allocation4 + $0x28] sm:$0xff]
        %v1154 = vld [vmem:[#allocation4 + $0x30] sm:$0xff]
        %v1155 = vld [vmem:[#allocation4 + $0x38] sm:$0xff]
        %v1156 = vld [vmem:[#allocation4 + $0x40] sm:$0xff]
        %v1157 = vld [vmem:[#allocation4 + $0x48] sm:$0xff]
        %v1158 = vld [vmem:[#allocation4 + $0x50] sm:$0xff]
        %v1159 = vld [vmem:[#allocation4 + $0x58] sm:$0xff]
        %v1160 = vld [vmem:[#allocation4 + $0x60] sm:$0xff]
        %v1161 = vld [vmem:[#allocation4 + $0x68] sm:$0xff]
        %v1162 = vld [vmem:[#allocation4 + $0x70] sm:$0xff]
        %v1163 = vld [vmem:[#allocation4 + $0x78] sm:$0xff]
        %v1164 = vld [vmem:[%s5] sm:$0x1]
        %v1166 = vlaneseq
        %v1167 = vshrl.u32 %v1166, 7
        %v1168 = vsub.s32 0, %v1167
        %v1169 = vrot.slane %v1164, %v1168
        %v1171 = vadd.f32 %v1148, %v1169
        %v1172 = vadd.f32 %v1149, %v1169
        %v1173 = vadd.f32 %v1150, %v1169
        %v1174 = vadd.f32 %v1151, %v1169
        %v1175 = vadd.f32 %v1152, %v1169
        %v1176 = vadd.f32 %v1153, %v1169
        %v1177 = vadd.f32 %v1154, %v1169
        %v1178 = vadd.f32 %v1155, %v1169
        %v1179 = vadd.f32 %v1156, %v1169
        %v1180 = vadd.f32 %v1157, %v1169
        %v1181 = vadd.f32 %v1158, %v1169
        %v1182 = vadd.f32 %v1159, %v1169
        %v1183 = vadd.f32 %v1160, %v1169
        %v1184 = vadd.f32 %v1161, %v1169
        %v1185 = vadd.f32 %v1162, %v1169
        %v1186 = vadd.f32 %v1163, %v1169
        %1187 = vst [vmem:[%s351] sm:$0xff] %v1171
        %1188 = vst [vmem:[%s351 + $0x8] sm:$0xff] %v1172
        %1189 = vst [vmem:[%s351 + $0x10] sm:$0xff] %v1173
        %1190 = vst [vmem:[%s351 + $0x18] sm:$0xff] %v1174
        %1191 = vst [vmem:[%s351 + $0x20] sm:$0xff] %v1175
        %1192 = vst [vmem:[%s351 + $0x28] sm:$0xff] %v1176
        %1193 = vst [vmem:[%s351 + $0x30] sm:$0xff] %v1177
        %1194 = vst [vmem:[%s351 + $0x38] sm:$0xff] %v1178
        %1195 = vst [vmem:[%s351 + $0x40] sm:$0xff] %v1179
        %1196 = vst [vmem:[%s351 + $0x48] sm:$0xff] %v1180
        %1197 = vst [vmem:[%s351 + $0x50] sm:$0xff] %v1181
        %1198 = vst [vmem:[%s351 + $0x58] sm:$0xff] %v1182
        %1199 = vst [vmem:[%s351 + $0x60] sm:$0xff] %v1183
        %1200 = vst [vmem:[%s351 + $0x68] sm:$0xff] %v1184
        %1201 = vst [vmem:[%s351 + $0x70] sm:$0xff] %v1185
        %1202 = vst [vmem:[%s351 + $0x78] sm:$0xff] %v1186
      $region68: #{transmutation_gnn_forward.1} parent=43 // pred_fallthru
        _
      %s1203 = smul.u32 %s22, %s23
      %s1204 = smul.u32 16, %s1203
      %p1205 = scmp.lt.s32.totalorder %s1204, 15
      %s1206 = scalar_select %p1205, %s1204, 15
      %s1207 = smul.addr %s1206, 8
      %s1208 = scalar_lea.vmem %s6, %s1207
      // Predicated region
      $region69: #{transmutation_gnn_forward.1} parent=43 // pred_check
        %p1209 = pneg %p206
      $region70: #{transmutation_gnn_forward.1} parent=43 // pred_check_branch
        %1211 = sbr.rel (%p1209) target = $region72
      $region71: #{transmutation_gnn_forward.1} parent=43 // pred_region
        %s1212 = smul.u32 %s22, %s23
        %s1213 = smul.u32 16, %s1212
      $region72: #{transmutation_gnn_forward.1} parent=43 // pred_fallthru
        _
    $region44: #{transmutation_gnn_forward.1} parent=5 // pred_fallthru
      _
    %p1214 = scmp.le.s32.totalorder 2, %s12
    // Predicated region
    $region73: #{transmutation_gnn_forward.1} parent=5 // pred_check
      %p1215 = pneg %p1214
    $region74: #{transmutation_gnn_forward.1} parent=5 // pred_check_branch
      %1217 = sbr.rel (%p1215) target = $region76
    $region75: #{transmutation_gnn_forward.1} parent=5 // pred_region
      %s1218 = ssub.s32 %s12, 2
      // Predicated region
      $region77: #{transmutation_gnn_forward.1} parent=75 // pred_check
        %p1219 = pneg %p212
      $region78: #{transmutation_gnn_forward.1} parent=75 // pred_check_branch
        %1221 = sbr.rel (%p1219) target = $region80
      $region79: #{transmutation_gnn_forward.1} parent=75 // pred_region
        %s1222 = smul.u32 %s25, %s26
        %s1223 = smul.u32 16, %s1222
        %p1224 = scmp.lt.s32.totalorder %s1223, 15
        %s1225 = scalar_select %p1224, %s1223, 15
        %s1226 = smul.addr %s1225, 8
        %s1227 = scalar_lea.vmem %s6, %s1226
      $region80: #{transmutation_gnn_forward.1} parent=75 // pred_fallthru
        _
    $region76: #{transmutation_gnn_forward.1} parent=5 // pred_fallthru
      _
  $region6: #{transmutation_gnn_forward.1} parent=0 // loop_footer
    %s16 = sadd.s32 1, %s12
  $region7: #{transmutation_gnn_forward.1} parent=0 // loop_footer_branch
    %11 = sbr.rel target = $region3
  $region8: #{transmutation_gnn_forward.1} parent=0 // loop_exit
    _

</llo_original>
